<compile_context>
chip_gen: v5e
topology: v5e:2x2
jax: 0.10.0
libtpu: 0.0.40
codegen_flags: <defaults>
</compile_context>

<pallas_src>
import functools
import math

import jax
import jax.numpy as jnp
from jax.experimental import pallas as pl
from jax.experimental.pallas import tpu as pltpu


def _round_up(a, b):
    return -(-a // b) * b


def _degrade_kernel(nz_ref, ae_ref, ao_ref, xem_ref, xeh_ref, xom_ref, xoh_ref,
                    n_ref, out_ref, *, C, tHo, tH_in, Wo_l, nphase):
    shot = nz_ref[0]
    read = nz_ref[1]

    a_e = ae_ref[...]                      # (nphase*tHo, tH_in + HALO), f32
    a_o = ao_ref[...]
    ae_m, ae_h = a_e[:, :tH_in], a_e[:, tH_in:]
    ao_m, ao_h = a_o[:, :tH_in], a_o[:, tH_in:]

    for c in range(C):                     # C == 4 packed-RAW channels, unrolled
        # vertical PSF taps + 2x row pool for both column parities (MXU, f32 accum);
        # the halo rows come from the second (16-row) blocked view of the input.
        ye = (jnp.dot(ae_m, xem_ref[c], preferred_element_type=jnp.float32)
              + jnp.dot(ae_h, xeh_ref[c], preferred_element_type=jnp.float32))
        yo = (jnp.dot(ao_m, xom_ref[c], preferred_element_type=jnp.float32)
              + jnp.dot(ao_h, xoh_ref[c], preferred_element_type=jnp.float32))
        wp = ye.shape[-1]
        ye = ye.reshape(nphase, tHo, wp)
        yo = yo.reshape(nphase, tHo, wp)

        # horizontal taps + 2x column pool: (K+1)/2 unit-stride lane-shifted adds
        s = ye[0, :, 0:Wo_l] + yo[0, :, 0:Wo_l]
        for j in range(1, nphase):
            s = s + ye[j, :, j:j + Wo_l] + yo[j, :, j:j + Wo_l]

        # heteroscedastic (shot/read) gaussian noise, var = shot*x + read, clip [0,1]
        var = jnp.maximum(s, 0.0) * shot + read
        y = s + jnp.sqrt(jnp.maximum(var, 1e-12)) * n_ref[c]
        out_ref[c, :, :] = jnp.clip(y, 0.0, 1.0)


@functools.partial(jax.jit, static_argnames=("tile_ho",))
def rawsr_degradation_pipeline_v2(img_hwc, psf, shot, read, noise_hwc, *, tile_ho=64):
    """img (H, W, 4) in [0,1] -> degraded (H/2, W/2, 4)."""
    H, W, C = img_hwc.shape
    K = int(psf.shape[0])
    assert psf.shape == (K, K) and K % 2 == 1 and K >= 3, "PSF must be odd-sized >= 3"
    assert H % 2 == 0 and W % 2 == 0, "packed-RAW H/W must be even"
    pad = K // 2
    Ho, Wo = H // 2, W // 2
    assert noise_hwc.shape == (Ho, Wo, C)

    # ---- tiling / padding geometry ------------------------------------------
    HALO = max(16, _round_up(K - 1, 16))          # halo rows (multiple of 16 >= K-1)
    tHo = _round_up(min(tile_ho, Ho), HALO // 2)  # output rows per grid step
    nT = -(-Ho // tHo)
    Ho_pad = nT * tHo
    tH_in = 2 * tHo                               # main input rows per grid step
    tH_ext = tH_in + HALO
    Hp = nT * tH_in + HALO                        # padded input height
    Wo_l = _round_up(Wo, 128)                     # lane-dense output width
    Wp = Wo_l + 128                               # per-parity input plane width
    nphase = pad + 1                              # (K+1)/2 column phases per parity
    halo_blk = tH_in // HALO

    # ---- single host pre-pass: HWC->CHW, zero pad, even/odd column split -----
    x = jnp.transpose(img_hwc.astype(jnp.float32), (2, 0, 1))
    xp = jnp.pad(x, ((0, 0), (pad, Hp - pad - H), (pad, 2 * Wp - pad - W)))
    xe = xp[:, :, 0::2]                           # (C, Hp, Wp) even columns
    xo = xp[:, :, 1::2]                           # (C, Hp, Wp) odd columns

    # ---- fuse blur + 2x2 mean pool: Q = 0.25 * (psf conv box2), (K+1, K+1) ----
    psf32 = psf.astype(jnp.float32)
    Q = 0.25 * (jnp.pad(psf32, ((0, 1), (0, 1))) + jnp.pad(psf32, ((1, 0), (0, 1)))
                + jnp.pad(psf32, ((0, 1), (1, 0))) + jnp.pad(psf32, ((1, 0), (1, 0))))

    # ---- banded vertical-tap + row-pool matrices, built ONCE (hoisted) --------
    ho_idx = jnp.arange(tHo)
    h_idx = jnp.arange(tH_ext)
    diff = h_idx[None, :] - 2 * ho_idx[:, None]   # (tHo, tH_ext)
    valid = (diff >= 0) & (diff <= K)
    qg = jnp.where(valid[:, :, None], Q[jnp.clip(diff, 0, K), :], 0.0)
    a_all = jnp.transpose(qg, (2, 0, 1))          # (K+1, tHo, tH_ext)
    a_even = a_all[0::2].reshape(nphase * tHo, tH_ext)
    a_odd = a_all[1::2].reshape(nphase * tHo, tH_ext)

    # ---- quarter-resolution standard-normal field, tiled along with output ----
    nfield = jnp.transpose(noise_hwc.astype(jnp.float32), (2, 0, 1))
    nfield = jnp.pad(nfield, ((0, 0), (0, Ho_pad - Ho), (0, Wo_l - Wo)))
    nz = jnp.stack([jnp.asarray(shot, jnp.float32), jnp.asarray(read, jnp.float32)])

    kernel = functools.partial(_degrade_kernel, C=C, tHo=tHo, tH_in=tH_in,
                               Wo_l=Wo_l, nphase=nphase)
    out = pl.pallas_call(
        kernel,
        out_shape=jax.ShapeDtypeStruct((C, Ho_pad, Wo_l), jnp.float32),
        grid=(nT,),
        in_specs=[
            pl.BlockSpec(memory_space=pltpu.MemorySpace.SMEM),                  # shot/read
            pl.BlockSpec((nphase * tHo, tH_ext), lambda i: (0, 0)),             # A_even
            pl.BlockSpec((nphase * tHo, tH_ext), lambda i: (0, 0)),             # A_odd
            pl.BlockSpec((C, tH_in, Wp), lambda i: (0, i, 0)),                  # xe main
            pl.BlockSpec((C, HALO, Wp), lambda i: (0, (i + 1) * halo_blk, 0)),  # xe halo
            pl.BlockSpec((C, tH_in, Wp), lambda i: (0, i, 0)),                  # xo main
            pl.BlockSpec((C, HALO, Wp), lambda i: (0, (i + 1) * halo_blk, 0)),  # xo halo
            pl.BlockSpec((C, tHo, Wo_l), lambda i: (0, i, 0)),                  # noise
        ],
        out_specs=pl.BlockSpec((C, tHo, Wo_l), lambda i: (0, i, 0)),
        compiler_params=pltpu.CompilerParams(
            dimension_semantics=("parallel",),     # v7x: split row tiles across 2 TCs
            vmem_limit_bytes=48 * 1024 * 1024,     # default tiles fit w/ headroom (<64MiB v7x)
        ),
    )(nz, a_even, a_odd, xe, xe, xo, xo, nfield)

    out = out[:, :Ho, :Wo]
    return jnp.transpose(out, (1, 2, 0))          # (H/2, W/2, C)


def _reference(img_hwc, psf, shot, read, noise_hwc):
    """Pure-JAX reference: 'same' blur -> 2x2 mean pool -> shot/read noise -> clip."""
    H, W, C = img_hwc.shape
    K = psf.shape[0]
    pad = K // 2
    Ho, Wo = H // 2, W // 2
    x = jnp.transpose(img_hwc.astype(jnp.float32), (2, 0, 1))
    xp = jnp.pad(x, ((0, 0), (pad, pad), (pad, pad)))
    blur = jnp.zeros_like(x)
    for dy in range(K):
        for dx in range(K):
            blur = blur + psf[dy, dx] * xp[:, dy:dy + H, dx:dx + W]
    d = blur.reshape(C, Ho, 2, Wo, 2).mean(axis=(2, 4))
    n = jnp.transpose(noise_hwc.astype(jnp.float32), (2, 0, 1))
    var = jnp.maximum(d, 0.0) * shot + read
    y = jnp.clip(d + jnp.sqrt(jnp.maximum(var, 1e-12)) * n, 0.0, 1.0)
    return jnp.transpose(y, (1, 2, 0))


if __name__ == "__main__":
    key = jax.random.PRNGKey(0)
    k_img, k_noise, k_p, k_shot, k_read = jax.random.split(key, 5)

    H, W, C = 32, 32, 4
    img = jax.random.uniform(k_img, (H, W, C), dtype=jnp.float32)   # packed RAW in [0,1]

    # TODO(synk): the PyTorch module samples a measured PSF from kernels.npy
    # (np.random.choice + optional random rotation); a deterministic normalized
    # 5x5 gaussian stands in here.
    K = 5
    sigma = 1.2
    ax = jnp.arange(K, dtype=jnp.float32) - (K - 1) / 2.0
    g = jnp.exp(-0.5 * (ax / sigma) ** 2)
    psf = jnp.outer(g, g)
    psf = psf / jnp.sum(psf)

    # TODO(synk): the host-side np.random.rand() branch (add_natural_noise vs
    # add_heteroscedastic_gnoise) has no in-kernel equivalent; reproduced
    # deterministically from PRNGKey(0) here.
    p_noise = float(jax.random.uniform(k_p))
    if p_noise > 0.3:
        log_shot = float(jax.random.uniform(k_shot, minval=math.log(1e-4),
                                            maxval=math.log(1.2e-2)))
        shot = math.exp(log_shot)
        read = math.exp(2.18 * log_shot + 1.2 + 0.26 * float(jax.random.normal(k_read)))
    else:
        shot, read = 2e-3, 1e-4

    Ho, Wo = H // 2, W // 2
    noise = jax.random.normal(k_noise, (Ho, Wo, C), dtype=jnp.float32)

    out = rawsr_degradation_pipeline_v2(img, psf, shot, read, noise, tile_ho=8)
    out = jax.block_until_ready(out)
    assert out.shape == (Ho, Wo, C) and out.dtype == jnp.float32
    assert bool(jnp.all(jnp.isfinite(out)))

    ref = _reference(img, psf, shot, read, noise)
    max_err = float(jnp.max(jnp.abs(out - ref)))
    assert max_err < 5e-4, f"mismatch vs reference, max abs err = {max_err}"

    print("KERNEL_OK")
</pallas_src>

<mosaic_0001>
module attributes {stable_mosaic.version = 11 : i64} {
  func.func @_degrade_kernel(%arg0: i32, %arg1: memref<2xf32, #tpu.memory_space<smem>>, %arg2: memref<24x32xf32, #tpu.memory_space<vmem>>, %arg3: memref<24x32xf32, #tpu.memory_space<vmem>>, %arg4: memref<4x16x256xf32, #tpu.memory_space<vmem>>, %arg5: memref<4x16x256xf32, #tpu.memory_space<vmem>>, %arg6: memref<4x16x256xf32, #tpu.memory_space<vmem>>, %arg7: memref<4x16x256xf32, #tpu.memory_space<vmem>>, %arg8: memref<4x8x128xf32, #tpu.memory_space<vmem>>, %arg9: memref<4x8x128xf32, #tpu.memory_space<vmem>>) attributes {dimension_semantics = [#tpu.dimension_semantics<parallel>], iteration_bounds = array<i64: 2>, scalar_prefetch = 0 : i64, scratch_operands = 0 : i64, tpu.core_type = #tpu.core_type<tc>, window_params = [{transform_indices = @transform_0, window_bounds = array<i64: 2>}, {pipeline_mode = #tpu.pipeline_mode<synchronous>, transform_indices = @transform_1, window_bounds = array<i64: 24, 32>}, {pipeline_mode = #tpu.pipeline_mode<synchronous>, transform_indices = @transform_2, window_bounds = array<i64: 24, 32>}, {transform_indices = @transform_3, window_bounds = array<i64: 4, 16, 256>}, {transform_indices = @transform_4, window_bounds = array<i64: 4, 16, 256>}, {transform_indices = @transform_5, window_bounds = array<i64: 4, 16, 256>}, {transform_indices = @transform_6, window_bounds = array<i64: 4, 16, 256>}, {transform_indices = @transform_7, window_bounds = array<i64: 4, 8, 128>}, {transform_indices = @transform_8, window_bounds = array<i64: 4, 8, 128>}]} {
    %c0 = arith.constant 0 : index
    %0 = memref.load %arg1[%c0] : memref<2xf32, #tpu.memory_space<smem>>
    %c1 = arith.constant 1 : index
    %1 = memref.load %arg1[%c1] : memref<2xf32, #tpu.memory_space<smem>>
    %c0_0 = arith.constant 0 : index
    %c0_1 = arith.constant 0 : index
    %2 = vector.load %arg2[%c0_0, %c0_1] : memref<24x32xf32, #tpu.memory_space<vmem>>, vector<24x32xf32>
    %c0_2 = arith.constant 0 : index
    %c0_3 = arith.constant 0 : index
    %3 = vector.load %arg3[%c0_2, %c0_3] : memref<24x32xf32, #tpu.memory_space<vmem>>, vector<24x32xf32>
    %4 = vector.extract_strided_slice %2 {offsets = [0, 0], sizes = [24, 16], strides = [1, 1]} : vector<24x32xf32> to vector<24x16xf32>
    %5 = vector.extract_strided_slice %2 {offsets = [0, 16], sizes = [24, 16], strides = [1, 1]} : vector<24x32xf32> to vector<24x16xf32>
    %6 = vector.extract_strided_slice %3 {offsets = [0, 0], sizes = [24, 16], strides = [1, 1]} : vector<24x32xf32> to vector<24x16xf32>
    %7 = vector.extract_strided_slice %3 {offsets = [0, 16], sizes = [24, 16], strides = [1, 1]} : vector<24x32xf32> to vector<24x16xf32>
    %c0_4 = arith.constant 0 : index
    %c0_5 = arith.constant 0 : index
    %c0_6 = arith.constant 0 : index
    %8 = vector.load %arg4[%c0_4, %c0_5, %c0_6] : memref<4x16x256xf32, #tpu.memory_space<vmem>>, vector<1x16x256xf32>
    %9 = vector.shape_cast %8 : vector<1x16x256xf32> to vector<16x256xf32>
    %cst = arith.constant dense<0.000000e+00> : vector<24x256xf32>
    %10 = tpu.matmul %4, %9, %cst {dimension_numbers = #tpu.dot_dimension_numbers<[1], [0], [0], [1], [0, 0, 1, 1], [], []>} : vector<24x16xf32>, vector<16x256xf32>, vector<24x256xf32> -> vector<24x256xf32>
    %c0_7 = arith.constant 0 : index
    %c0_8 = arith.constant 0 : index
    %c0_9 = arith.constant 0 : index
    %11 = vector.load %arg5[%c0_7, %c0_8, %c0_9] : memref<4x16x256xf32, #tpu.memory_space<vmem>>, vector<1x16x256xf32>
    %12 = vector.shape_cast %11 : vector<1x16x256xf32> to vector<16x256xf32>
    %cst_10 = arith.constant dense<0.000000e+00> : vector<24x256xf32>
    %13 = tpu.matmul %5, %12, %cst_10 {dimension_numbers = #tpu.dot_dimension_numbers<[1], [0], [0], [1], [0, 0, 1, 1], [], []>} : vector<24x16xf32>, vector<16x256xf32>, vector<24x256xf32> -> vector<24x256xf32>
    %14 = arith.addf %10, %13 : vector<24x256xf32>
    %c0_11 = arith.constant 0 : index
    %c0_12 = arith.constant 0 : index
    %c0_13 = arith.constant 0 : index
    %15 = vector.load %arg6[%c0_11, %c0_12, %c0_13] : memref<4x16x256xf32, #tpu.memory_space<vmem>>, vector<1x16x256xf32>
    %16 = vector.shape_cast %15 : vector<1x16x256xf32> to vector<16x256xf32>
    %cst_14 = arith.constant dense<0.000000e+00> : vector<24x256xf32>
    %17 = tpu.matmul %6, %16, %cst_14 {dimension_numbers = #tpu.dot_dimension_numbers<[1], [0], [0], [1], [0, 0, 1, 1], [], []>} : vector<24x16xf32>, vector<16x256xf32>, vector<24x256xf32> -> vector<24x256xf32>
    %c0_15 = arith.constant 0 : index
    %c0_16 = arith.constant 0 : index
    %c0_17 = arith.constant 0 : index
    %18 = vector.load %arg7[%c0_15, %c0_16, %c0_17] : memref<4x16x256xf32, #tpu.memory_space<vmem>>, vector<1x16x256xf32>
    %19 = vector.shape_cast %18 : vector<1x16x256xf32> to vector<16x256xf32>
    %cst_18 = arith.constant dense<0.000000e+00> : vector<24x256xf32>
    %20 = tpu.matmul %7, %19, %cst_18 {dimension_numbers = #tpu.dot_dimension_numbers<[1], [0], [0], [1], [0, 0, 1, 1], [], []>} : vector<24x16xf32>, vector<16x256xf32>, vector<24x256xf32> -> vector<24x256xf32>
    %21 = arith.addf %17, %20 : vector<24x256xf32>
    %22 = vector.shape_cast %14 : vector<24x256xf32> to vector<3x8x256xf32>
    %23 = vector.shape_cast %21 : vector<24x256xf32> to vector<3x8x256xf32>
    %24 = vector.extract_strided_slice %22 {offsets = [0, 0, 0], sizes = [1, 8, 128], strides = [1, 1, 1]} : vector<3x8x256xf32> to vector<1x8x128xf32>
    %25 = vector.shape_cast %24 : vector<1x8x128xf32> to vector<8x128xf32>
    %26 = vector.extract_strided_slice %23 {offsets = [0, 0, 0], sizes = [1, 8, 128], strides = [1, 1, 1]} : vector<3x8x256xf32> to vector<1x8x128xf32>
    %27 = vector.shape_cast %26 : vector<1x8x128xf32> to vector<8x128xf32>
    %28 = arith.addf %25, %27 : vector<8x128xf32>
    %29 = vector.extract_strided_slice %22 {offsets = [1, 0, 1], sizes = [1, 8, 128], strides = [1, 1, 1]} : vector<3x8x256xf32> to vector<1x8x128xf32>
    %30 = vector.shape_cast %29 : vector<1x8x128xf32> to vector<8x128xf32>
    %31 = arith.addf %28, %30 : vector<8x128xf32>
    %32 = vector.extract_strided_slice %23 {offsets = [1, 0, 1], sizes = [1, 8, 128], strides = [1, 1, 1]} : vector<3x8x256xf32> to vector<1x8x128xf32>
    %33 = vector.shape_cast %32 : vector<1x8x128xf32> to vector<8x128xf32>
    %34 = arith.addf %31, %33 : vector<8x128xf32>
    %35 = vector.extract_strided_slice %22 {offsets = [2, 0, 2], sizes = [1, 8, 128], strides = [1, 1, 1]} : vector<3x8x256xf32> to vector<1x8x128xf32>
    %36 = vector.shape_cast %35 : vector<1x8x128xf32> to vector<8x128xf32>
    %37 = arith.addf %34, %36 : vector<8x128xf32>
    %38 = vector.extract_strided_slice %23 {offsets = [2, 0, 2], sizes = [1, 8, 128], strides = [1, 1, 1]} : vector<3x8x256xf32> to vector<1x8x128xf32>
    %39 = vector.shape_cast %38 : vector<1x8x128xf32> to vector<8x128xf32>
    %40 = arith.addf %37, %39 : vector<8x128xf32>
    %cst_19 = arith.constant 0.000000e+00 : f32
    %41 = vector.broadcast %cst_19 : f32 to vector<8x128xf32>
    %42 = arith.maximumf %40, %41 : vector<8x128xf32>
    %43 = vector.broadcast %0 : f32 to vector<8x128xf32>
    %44 = arith.mulf %42, %43 : vector<8x128xf32>
    %45 = vector.broadcast %1 : f32 to vector<8x128xf32>
    %46 = arith.addf %44, %45 : vector<8x128xf32>
    %cst_20 = arith.constant 9.99999996E-13 : f32
    %47 = vector.broadcast %cst_20 : f32 to vector<8x128xf32>
    %48 = arith.maximumf %46, %47 : vector<8x128xf32>
    %49 = math.sqrt %48 : vector<8x128xf32>
    %c0_21 = arith.constant 0 : index
    %c0_22 = arith.constant 0 : index
    %c0_23 = arith.constant 0 : index
    %50 = vector.load %arg8[%c0_21, %c0_22, %c0_23] : memref<4x8x128xf32, #tpu.memory_space<vmem>>, vector<1x8x128xf32>
    %51 = vector.shape_cast %50 : vector<1x8x128xf32> to vector<8x128xf32>
    %52 = arith.mulf %49, %51 : vector<8x128xf32>
    %53 = arith.addf %40, %52 : vector<8x128xf32>
    %cst_24 = arith.constant 0.000000e+00 : f32
    %cst_25 = arith.constant 1.000000e+00 : f32
    %54 = vector.broadcast %cst_24 : f32 to vector<8x128xf32>
    %55 = arith.maximumf %54, %53 : vector<8x128xf32>
    %56 = vector.broadcast %cst_25 : f32 to vector<8x128xf32>
    %57 = arith.minimumf %56, %55 : vector<8x128xf32>
    %c0_26 = arith.constant 0 : index
    %c0_27 = arith.constant 0 : index
    %c0_28 = arith.constant 0 : index
    %58 = vector.load %arg9[%c0_26, %c0_27, %c0_28] : memref<4x8x128xf32, #tpu.memory_space<vmem>>, vector<1x8x128xf32>
    %59 = vector.shape_cast %58 : vector<1x8x128xf32> to vector<8x128xf32>
    %60 = vector.shape_cast %57 : vector<8x128xf32> to vector<1x8x128xf32>
    tpu.vector_store %arg9[%c0_26, %c0_27, %c0_28], %60 {strides = array<i32>} : memref<4x8x128xf32, #tpu.memory_space<vmem>>, vector<1x8x128xf32>,
    %c1_29 = arith.constant 1 : index
    %c0_30 = arith.constant 0 : index
    %c0_31 = arith.constant 0 : index
    %61 = vector.load %arg4[%c1_29, %c0_30, %c0_31] : memref<4x16x256xf32, #tpu.memory_space<vmem>>, vector<1x16x256xf32>
    %62 = vector.shape_cast %61 : vector<1x16x256xf32> to vector<16x256xf32>
    %cst_32 = arith.constant dense<0.000000e+00> : vector<24x256xf32>
    %63 = tpu.matmul %4, %62, %cst_32 {dimension_numbers = #tpu.dot_dimension_numbers<[1], [0], [0], [1], [0, 0, 1, 1], [], []>} : vector<24x16xf32>, vector<16x256xf32>, vector<24x256xf32> -> vector<24x256xf32>
    %c1_33 = arith.constant 1 : index
    %c0_34 = arith.constant 0 : index
    %c0_35 = arith.constant 0 : index
    %64 = vector.load %arg5[%c1_33, %c0_34, %c0_35] : memref<4x16x256xf32, #tpu.memory_space<vmem>>, vector<1x16x256xf32>
    %65 = vector.shape_cast %64 : vector<1x16x256xf32> to vector<16x256xf32>
    %cst_36 = arith.constant dense<0.000000e+00> : vector<24x256xf32>
    %66 = tpu.matmul %5, %65, %cst_36 {dimension_numbers = #tpu.dot_dimension_numbers<[1], [0], [0], [1], [0, 0, 1, 1], [], []>} : vector<24x16xf32>, vector<16x256xf32>, vector<24x256xf32> -> vector<24x256xf32>
    %67 = arith.addf %63, %66 : vector<24x256xf32>
    %c1_37 = arith.constant 1 : index
    %c0_38 = arith.constant 0 : index
    %c0_39 = arith.constant 0 : index
    %68 = vector.load %arg6[%c1_37, %c0_38, %c0_39] : memref<4x16x256xf32, #tpu.memory_space<vmem>>, vector<1x16x256xf32>
    %69 = vector.shape_cast %68 : vector<1x16x256xf32> to vector<16x256xf32>
    %cst_40 = arith.constant dense<0.000000e+00> : vector<24x256xf32>
    %70 = tpu.matmul %6, %69, %cst_40 {dimension_numbers = #tpu.dot_dimension_numbers<[1], [0], [0], [1], [0, 0, 1, 1], [], []>} : vector<24x16xf32>, vector<16x256xf32>, vector<24x256xf32> -> vector<24x256xf32>
    %c1_41 = arith.constant 1 : index
    %c0_42 = arith.constant 0 : index
    %c0_43 = arith.constant 0 : index
    %71 = vector.load %arg7[%c1_41, %c0_42, %c0_43] : memref<4x16x256xf32, #tpu.memory_space<vmem>>, vector<1x16x256xf32>
    %72 = vector.shape_cast %71 : vector<1x16x256xf32> to vector<16x256xf32>
    %cst_44 = arith.constant dense<0.000000e+00> : vector<24x256xf32>
    %73 = tpu.matmul %7, %72, %cst_44 {dimension_numbers = #tpu.dot_dimension_numbers<[1], [0], [0], [1], [0, 0, 1, 1], [], []>} : vector<24x16xf32>, vector<16x256xf32>, vector<24x256xf32> -> vector<24x256xf32>
    %74 = arith.addf %70, %73 : vector<24x256xf32>
    %75 = vector.shape_cast %67 : vector<24x256xf32> to vector<3x8x256xf32>
    %76 = vector.shape_cast %74 : vector<24x256xf32> to vector<3x8x256xf32>
    %77 = vector.extract_strided_slice %75 {offsets = [0, 0, 0], sizes = [1, 8, 128], strides = [1, 1, 1]} : vector<3x8x256xf32> to vector<1x8x128xf32>
    %78 = vector.shape_cast %77 : vector<1x8x128xf32> to vector<8x128xf32>
    %79 = vector.extract_strided_slice %76 {offsets = [0, 0, 0], sizes = [1, 8, 128], strides = [1, 1, 1]} : vector<3x8x256xf32> to vector<1x8x128xf32>
    %80 = vector.shape_cast %79 : vector<1x8x128xf32> to vector<8x128xf32>
    %81 = arith.addf %78, %80 : vector<8x128xf32>
    %82 = vector.extract_strided_slice %75 {offsets = [1, 0, 1], sizes = [1, 8, 128], strides = [1, 1, 1]} : vector<3x8x256xf32> to vector<1x8x128xf32>
    %83 = vector.shape_cast %82 : vector<1x8x128xf32> to vector<8x128xf32>
    %84 = arith.addf %81, %83 : vector<8x128xf32>
    %85 = vector.extract_strided_slice %76 {offsets = [1, 0, 1], sizes = [1, 8, 128], strides = [1, 1, 1]} : vector<3x8x256xf32> to vector<1x8x128xf32>
    %86 = vector.shape_cast %85 : vector<1x8x128xf32> to vector<8x128xf32>
    %87 = arith.addf %84, %86 : vector<8x128xf32>
    %88 = vector.extract_strided_slice %75 {offsets = [2, 0, 2], sizes = [1, 8, 128], strides = [1, 1, 1]} : vector<3x8x256xf32> to vector<1x8x128xf32>
    %89 = vector.shape_cast %88 : vector<1x8x128xf32> to vector<8x128xf32>
    %90 = arith.addf %87, %89 : vector<8x128xf32>
    %91 = vector.extract_strided_slice %76 {offsets = [2, 0, 2], sizes = [1, 8, 128], strides = [1, 1, 1]} : vector<3x8x256xf32> to vector<1x8x128xf32>
    %92 = vector.shape_cast %91 : vector<1x8x128xf32> to vector<8x128xf32>
    %93 = arith.addf %90, %92 : vector<8x128xf32>
    %cst_45 = arith.constant 0.000000e+00 : f32
    %94 = vector.broadcast %cst_45 : f32 to vector<8x128xf32>
    %95 = arith.maximumf %93, %94 : vector<8x128xf32>
    %96 = vector.broadcast %0 : f32 to vector<8x128xf32>
    %97 = arith.mulf %95, %96 : vector<8x128xf32>
    %98 = vector.broadcast %1 : f32 to vector<8x128xf32>
    %99 = arith.addf %97, %98 : vector<8x128xf32>
    %cst_46 = arith.constant 9.99999996E-13 : f32
    %100 = vector.broadcast %cst_46 : f32 to vector<8x128xf32>
    %101 = arith.maximumf %99, %100 : vector<8x128xf32>
    %102 = math.sqrt %101 : vector<8x128xf32>
    %c1_47 = arith.constant 1 : index
    %c0_48 = arith.constant 0 : index
    %c0_49 = arith.constant 0 : index
    %103 = vector.load %arg8[%c1_47, %c0_48, %c0_49] : memref<4x8x128xf32, #tpu.memory_space<vmem>>, vector<1x8x128xf32>
    %104 = vector.shape_cast %103 : vector<1x8x128xf32> to vector<8x128xf32>
    %105 = arith.mulf %102, %104 : vector<8x128xf32>
    %106 = arith.addf %93, %105 : vector<8x128xf32>
    %cst_50 = arith.constant 0.000000e+00 : f32
    %cst_51 = arith.constant 1.000000e+00 : f32
    %107 = vector.broadcast %cst_50 : f32 to vector<8x128xf32>
    %108 = arith.maximumf %107, %106 : vector<8x128xf32>
    %109 = vector.broadcast %cst_51 : f32 to vector<8x128xf32>
    %110 = arith.minimumf %109, %108 : vector<8x128xf32>
    %c1_52 = arith.constant 1 : index
    %c0_53 = arith.constant 0 : index
    %c0_54 = arith.constant 0 : index
    %111 = vector.load %arg9[%c1_52, %c0_53, %c0_54] : memref<4x8x128xf32, #tpu.memory_space<vmem>>, vector<1x8x128xf32>
    %112 = vector.shape_cast %111 : vector<1x8x128xf32> to vector<8x128xf32>
    %113 = vector.shape_cast %110 : vector<8x128xf32> to vector<1x8x128xf32>
    tpu.vector_store %arg9[%c1_52, %c0_53, %c0_54], %113 {strides = array<i32>} : memref<4x8x128xf32, #tpu.memory_space<vmem>>, vector<1x8x128xf32>,
    %c2 = arith.constant 2 : index
    %c0_55 = arith.constant 0 : index
    %c0_56 = arith.constant 0 : index
    %114 = vector.load %arg4[%c2, %c0_55, %c0_56] : memref<4x16x256xf32, #tpu.memory_space<vmem>>, vector<1x16x256xf32>
    %115 = vector.shape_cast %114 : vector<1x16x256xf32> to vector<16x256xf32>
    %cst_57 = arith.constant dense<0.000000e+00> : vector<24x256xf32>
    %116 = tpu.matmul %4, %115, %cst_57 {dimension_numbers = #tpu.dot_dimension_numbers<[1], [0], [0], [1], [0, 0, 1, 1], [], []>} : vector<24x16xf32>, vector<16x256xf32>, vector<24x256xf32> -> vector<24x256xf32>
    %c2_58 = arith.constant 2 : index
    %c0_59 = arith.constant 0 : index
    %c0_60 = arith.constant 0 : index
    %117 = vector.load %arg5[%c2_58, %c0_59, %c0_60] : memref<4x16x256xf32, #tpu.memory_space<vmem>>, vector<1x16x256xf32>
    %118 = vector.shape_cast %117 : vector<1x16x256xf32> to vector<16x256xf32>
    %cst_61 = arith.constant dense<0.000000e+00> : vector<24x256xf32>
    %119 = tpu.matmul %5, %118, %cst_61 {dimension_numbers = #tpu.dot_dimension_numbers<[1], [0], [0], [1], [0, 0, 1, 1], [], []>} : vector<24x16xf32>, vector<16x256xf32>, vector<24x256xf32> -> vector<24x256xf32>
    %120 = arith.addf %116, %119 : vector<24x256xf32>
    %c2_62 = arith.constant 2 : index
    %c0_63 = arith.constant 0 : index
    %c0_64 = arith.constant 0 : index
    %121 = vector.load %arg6[%c2_62, %c0_63, %c0_64] : memref<4x16x256xf32, #tpu.memory_space<vmem>>, vector<1x16x256xf32>
    %122 = vector.shape_cast %121 : vector<1x16x256xf32> to vector<16x256xf32>
    %cst_65 = arith.constant dense<0.000000e+00> : vector<24x256xf32>
    %123 = tpu.matmul %6, %122, %cst_65 {dimension_numbers = #tpu.dot_dimension_numbers<[1], [0], [0], [1], [0, 0, 1, 1], [], []>} : vector<24x16xf32>, vector<16x256xf32>, vector<24x256xf32> -> vector<24x256xf32>
    %c2_66 = arith.constant 2 : index
    %c0_67 = arith.constant 0 : index
    %c0_68 = arith.constant 0 : index
    %124 = vector.load %arg7[%c2_66, %c0_67, %c0_68] : memref<4x16x256xf32, #tpu.memory_space<vmem>>, vector<1x16x256xf32>
    %125 = vector.shape_cast %124 : vector<1x16x256xf32> to vector<16x256xf32>
    %cst_69 = arith.constant dense<0.000000e+00> : vector<24x256xf32>
    %126 = tpu.matmul %7, %125, %cst_69 {dimension_numbers = #tpu.dot_dimension_numbers<[1], [0], [0], [1], [0, 0, 1, 1], [], []>} : vector<24x16xf32>, vector<16x256xf32>, vector<24x256xf32> -> vector<24x256xf32>
    %127 = arith.addf %123, %126 : vector<24x256xf32>
    %128 = vector.shape_cast %120 : vector<24x256xf32> to vector<3x8x256xf32>
    %129 = vector.shape_cast %127 : vector<24x256xf32> to vector<3x8x256xf32>
    %130 = vector.extract_strided_slice %128 {offsets = [0, 0, 0], sizes = [1, 8, 128], strides = [1, 1, 1]} : vector<3x8x256xf32> to vector<1x8x128xf32>
    %131 = vector.shape_cast %130 : vector<1x8x128xf32> to vector<8x128xf32>
    %132 = vector.extract_strided_slice %129 {offsets = [0, 0, 0], sizes = [1, 8, 128], strides = [1, 1, 1]} : vector<3x8x256xf32> to vector<1x8x128xf32>
    %133 = vector.shape_cast %132 : vector<1x8x128xf32> to vector<8x128xf32>
    %134 = arith.addf %131, %133 : vector<8x128xf32>
    %135 = vector.extract_strided_slice %128 {offsets = [1, 0, 1], sizes = [1, 8, 128], strides = [1, 1, 1]} : vector<3x8x256xf32> to vector<1x8x128xf32>
    %136 = vector.shape_cast %135 : vector<1x8x128xf32> to vector<8x128xf32>
    %137 = arith.addf %134, %136 : vector<8x128xf32>
    %138 = vector.extract_strided_slice %129 {offsets = [1, 0, 1], sizes = [1, 8, 128], strides = [1, 1, 1]} : vector<3x8x256xf32> to vector<1x8x128xf32>
    %139 = vector.shape_cast %138 : vector<1x8x128xf32> to vector<8x128xf32>
    %140 = arith.addf %137, %139 : vector<8x128xf32>
    %141 = vector.extract_strided_slice %128 {offsets = [2, 0, 2], sizes = [1, 8, 128], strides = [1, 1, 1]} : vector<3x8x256xf32> to vector<1x8x128xf32>
    %142 = vector.shape_cast %141 : vector<1x8x128xf32> to vector<8x128xf32>
    %143 = arith.addf %140, %142 : vector<8x128xf32>
    %144 = vector.extract_strided_slice %129 {offsets = [2, 0, 2], sizes = [1, 8, 128], strides = [1, 1, 1]} : vector<3x8x256xf32> to vector<1x8x128xf32>
    %145 = vector.shape_cast %144 : vector<1x8x128xf32> to vector<8x128xf32>
    %146 = arith.addf %143, %145 : vector<8x128xf32>
    %cst_70 = arith.constant 0.000000e+00 : f32
    %147 = vector.broadcast %cst_70 : f32 to vector<8x128xf32>
    %148 = arith.maximumf %146, %147 : vector<8x128xf32>
    %149 = vector.broadcast %0 : f32 to vector<8x128xf32>
    %150 = arith.mulf %148, %149 : vector<8x128xf32>
    %151 = vector.broadcast %1 : f32 to vector<8x128xf32>
    %152 = arith.addf %150, %151 : vector<8x128xf32>
    %cst_71 = arith.constant 9.99999996E-13 : f32
    %153 = vector.broadcast %cst_71 : f32 to vector<8x128xf32>
    %154 = arith.maximumf %152, %153 : vector<8x128xf32>
    %155 = math.sqrt %154 : vector<8x128xf32>
    %c2_72 = arith.constant 2 : index
    %c0_73 = arith.constant 0 : index
    %c0_74 = arith.constant 0 : index
    %156 = vector.load %arg8[%c2_72, %c0_73, %c0_74] : memref<4x8x128xf32, #tpu.memory_space<vmem>>, vector<1x8x128xf32>
    %157 = vector.shape_cast %156 : vector<1x8x128xf32> to vector<8x128xf32>
    %158 = arith.mulf %155, %157 : vector<8x128xf32>
    %159 = arith.addf %146, %158 : vector<8x128xf32>
    %cst_75 = arith.constant 0.000000e+00 : f32
    %cst_76 = arith.constant 1.000000e+00 : f32
    %160 = vector.broadcast %cst_75 : f32 to vector<8x128xf32>
    %161 = arith.maximumf %160, %159 : vector<8x128xf32>
    %162 = vector.broadcast %cst_76 : f32 to vector<8x128xf32>
    %163 = arith.minimumf %162, %161 : vector<8x128xf32>
    %c2_77 = arith.constant 2 : index
    %c0_78 = arith.constant 0 : index
    %c0_79 = arith.constant 0 : index
    %164 = vector.load %arg9[%c2_77, %c0_78, %c0_79] : memref<4x8x128xf32, #tpu.memory_space<vmem>>, vector<1x8x128xf32>
    %165 = vector.shape_cast %164 : vector<1x8x128xf32> to vector<8x128xf32>
    %166 = vector.shape_cast %163 : vector<8x128xf32> to vector<1x8x128xf32>
    tpu.vector_store %arg9[%c2_77, %c0_78, %c0_79], %166 {strides = array<i32>} : memref<4x8x128xf32, #tpu.memory_space<vmem>>, vector<1x8x128xf32>,
    %c3 = arith.constant 3 : index
    %c0_80 = arith.constant 0 : index
    %c0_81 = arith.constant 0 : index
    %167 = vector.load %arg4[%c3, %c0_80, %c0_81] : memref<4x16x256xf32, #tpu.memory_space<vmem>>, vector<1x16x256xf32>
    %168 = vector.shape_cast %167 : vector<1x16x256xf32> to vector<16x256xf32>
    %cst_82 = arith.constant dense<0.000000e+00> : vector<24x256xf32>
    %169 = tpu.matmul %4, %168, %cst_82 {dimension_numbers = #tpu.dot_dimension_numbers<[1], [0], [0], [1], [0, 0, 1, 1], [], []>} : vector<24x16xf32>, vector<16x256xf32>, vector<24x256xf32> -> vector<24x256xf32>
    %c3_83 = arith.constant 3 : index
    %c0_84 = arith.constant 0 : index
    %c0_85 = arith.constant 0 : index
    %170 = vector.load %arg5[%c3_83, %c0_84, %c0_85] : memref<4x16x256xf32, #tpu.memory_space<vmem>>, vector<1x16x256xf32>
    %171 = vector.shape_cast %170 : vector<1x16x256xf32> to vector<16x256xf32>
    %cst_86 = arith.constant dense<0.000000e+00> : vector<24x256xf32>
    %172 = tpu.matmul %5, %171, %cst_86 {dimension_numbers = #tpu.dot_dimension_numbers<[1], [0], [0], [1], [0, 0, 1, 1], [], []>} : vector<24x16xf32>, vector<16x256xf32>, vector<24x256xf32> -> vector<24x256xf32>
    %173 = arith.addf %169, %172 : vector<24x256xf32>
    %c3_87 = arith.constant 3 : index
    %c0_88 = arith.constant 0 : index
    %c0_89 = arith.constant 0 : index
    %174 = vector.load %arg6[%c3_87, %c0_88, %c0_89] : memref<4x16x256xf32, #tpu.memory_space<vmem>>, vector<1x16x256xf32>
    %175 = vector.shape_cast %174 : vector<1x16x256xf32> to vector<16x256xf32>
    %cst_90 = arith.constant dense<0.000000e+00> : vector<24x256xf32>
    %176 = tpu.matmul %6, %175, %cst_90 {dimension_numbers = #tpu.dot_dimension_numbers<[1], [0], [0], [1], [0, 0, 1, 1], [], []>} : vector<24x16xf32>, vector<16x256xf32>, vector<24x256xf32> -> vector<24x256xf32>
    %c3_91 = arith.constant 3 : index
    %c0_92 = arith.constant 0 : index
    %c0_93 = arith.constant 0 : index
    %177 = vector.load %arg7[%c3_91, %c0_92, %c0_93] : memref<4x16x256xf32, #tpu.memory_space<vmem>>, vector<1x16x256xf32>
    %178 = vector.shape_cast %177 : vector<1x16x256xf32> to vector<16x256xf32>
    %cst_94 = arith.constant dense<0.000000e+00> : vector<24x256xf32>
    %179 = tpu.matmul %7, %178, %cst_94 {dimension_numbers = #tpu.dot_dimension_numbers<[1], [0], [0], [1], [0, 0, 1, 1], [], []>} : vector<24x16xf32>, vector<16x256xf32>, vector<24x256xf32> -> vector<24x256xf32>
    %180 = arith.addf %176, %179 : vector<24x256xf32>
    %181 = vector.shape_cast %173 : vector<24x256xf32> to vector<3x8x256xf32>
    %182 = vector.shape_cast %180 : vector<24x256xf32> to vector<3x8x256xf32>
    %183 = vector.extract_strided_slice %181 {offsets = [0, 0, 0], sizes = [1, 8, 128], strides = [1, 1, 1]} : vector<3x8x256xf32> to vector<1x8x128xf32>
    %184 = vector.shape_cast %183 : vector<1x8x128xf32> to vector<8x128xf32>
    %185 = vector.extract_strided_slice %182 {offsets = [0, 0, 0], sizes = [1, 8, 128], strides = [1, 1, 1]} : vector<3x8x256xf32> to vector<1x8x128xf32>
    %186 = vector.shape_cast %185 : vector<1x8x128xf32> to vector<8x128xf32>
    %187 = arith.addf %184, %186 : vector<8x128xf32>
    %188 = vector.extract_strided_slice %181 {offsets = [1, 0, 1], sizes = [1, 8, 128], strides = [1, 1, 1]} : vector<3x8x256xf32> to vector<1x8x128xf32>
    %189 = vector.shape_cast %188 : vector<1x8x128xf32> to vector<8x128xf32>
    %190 = arith.addf %187, %189 : vector<8x128xf32>
    %191 = vector.extract_strided_slice %182 {offsets = [1, 0, 1], sizes = [1, 8, 128], strides = [1, 1, 1]} : vector<3x8x256xf32> to vector<1x8x128xf32>
    %192 = vector.shape_cast %191 : vector<1x8x128xf32> to vector<8x128xf32>
    %193 = arith.addf %190, %192 : vector<8x128xf32>
    %194 = vector.extract_strided_slice %181 {offsets = [2, 0, 2], sizes = [1, 8, 128], strides = [1, 1, 1]} : vector<3x8x256xf32> to vector<1x8x128xf32>
    %195 = vector.shape_cast %194 : vector<1x8x128xf32> to vector<8x128xf32>
    %196 = arith.addf %193, %195 : vector<8x128xf32>
    %197 = vector.extract_strided_slice %182 {offsets = [2, 0, 2], sizes = [1, 8, 128], strides = [1, 1, 1]} : vector<3x8x256xf32> to vector<1x8x128xf32>
    %198 = vector.shape_cast %197 : vector<1x8x128xf32> to vector<8x128xf32>
    %199 = arith.addf %196, %198 : vector<8x128xf32>
    %cst_95 = arith.constant 0.000000e+00 : f32
    %200 = vector.broadcast %cst_95 : f32 to vector<8x128xf32>
    %201 = arith.maximumf %199, %200 : vector<8x128xf32>
    %202 = vector.broadcast %0 : f32 to vector<8x128xf32>
    %203 = arith.mulf %201, %202 : vector<8x128xf32>
    %204 = vector.broadcast %1 : f32 to vector<8x128xf32>
    %205 = arith.addf %203, %204 : vector<8x128xf32>
    %cst_96 = arith.constant 9.99999996E-13 : f32
    %206 = vector.broadcast %cst_96 : f32 to vector<8x128xf32>
    %207 = arith.maximumf %205, %206 : vector<8x128xf32>
    %208 = math.sqrt %207 : vector<8x128xf32>
    %c3_97 = arith.constant 3 : index
    %c0_98 = arith.constant 0 : index
    %c0_99 = arith.constant 0 : index
    %209 = vector.load %arg8[%c3_97, %c0_98, %c0_99] : memref<4x8x128xf32, #tpu.memory_space<vmem>>, vector<1x8x128xf32>
    %210 = vector.shape_cast %209 : vector<1x8x128xf32> to vector<8x128xf32>
    %211 = arith.mulf %208, %210 : vector<8x128xf32>
    %212 = arith.addf %199, %211 : vector<8x128xf32>
    %cst_100 = arith.constant 0.000000e+00 : f32
    %cst_101 = arith.constant 1.000000e+00 : f32
    %213 = vector.broadcast %cst_100 : f32 to vector<8x128xf32>
    %214 = arith.maximumf %213, %212 : vector<8x128xf32>
    %215 = vector.broadcast %cst_101 : f32 to vector<8x128xf32>
    %216 = arith.minimumf %215, %214 : vector<8x128xf32>
    %c3_102 = arith.constant 3 : index
    %c0_103 = arith.constant 0 : index
    %c0_104 = arith.constant 0 : index
    %217 = vector.load %arg9[%c3_102, %c0_103, %c0_104] : memref<4x8x128xf32, #tpu.memory_space<vmem>>, vector<1x8x128xf32>
    %218 = vector.shape_cast %217 : vector<1x8x128xf32> to vector<8x128xf32>
    %219 = vector.shape_cast %216 : vector<8x128xf32> to vector<1x8x128xf32>
    tpu.vector_store %arg9[%c3_102, %c0_103, %c0_104], %219 {strides = array<i32>} : memref<4x8x128xf32, #tpu.memory_space<vmem>>, vector<1x8x128xf32>,
    return
  }
  func.func @transform_0(%arg0: i32) -> i32 {
    %c0_i32 = arith.constant 0 : i32
    %c0_i32_0 = arith.constant 0 : i32
    return %c0_i32 : i32
  }
  func.func @transform_1(%arg0: i32) -> (i32, i32) {
    %c0_i32 = arith.constant 0 : i32
    %c0_i32_0 = arith.constant 0 : i32
    %c0_i32_1 = arith.constant 0 : i32
    return %c0_i32, %c0_i32_0 : i32, i32
  }
  func.func @transform_2(%arg0: i32) -> (i32, i32) {
    %c0_i32 = arith.constant 0 : i32
    %c0_i32_0 = arith.constant 0 : i32
    %c0_i32_1 = arith.constant 0 : i32
    return %c0_i32, %c0_i32_0 : i32, i32
  }
  func.func @transform_3(%arg0: i32) -> (i32, i32, i32) {
    %c0_i32 = arith.constant 0 : i32
    %c0_i32_0 = arith.constant 0 : i32
    %c0_i32_1 = arith.constant 0 : i32
    return %c0_i32, %arg0, %c0_i32_0 : i32, i32, i32
  }
  func.func @transform_4(%arg0: i32) -> (i32, i32, i32) {
    %c1_i32 = arith.constant 1 : i32
    %0 = arith.addi %arg0, %c1_i32 : i32
    %c1_i32_0 = arith.constant 1 : i32
    %1 = arith.muli %0, %c1_i32_0 : i32
    %c0_i32 = arith.constant 0 : i32
    %c0_i32_1 = arith.constant 0 : i32
    %c0_i32_2 = arith.constant 0 : i32
    return %c0_i32, %1, %c0_i32_1 : i32, i32, i32
  }
  func.func @transform_5(%arg0: i32) -> (i32, i32, i32) {
    %c0_i32 = arith.constant 0 : i32
    %c0_i32_0 = arith.constant 0 : i32
    %c0_i32_1 = arith.constant 0 : i32
    return %c0_i32, %arg0, %c0_i32_0 : i32, i32, i32
  }
  func.func @transform_6(%arg0: i32) -> (i32, i32, i32) {
    %c1_i32 = arith.constant 1 : i32
    %0 = arith.addi %arg0, %c1_i32 : i32
    %c1_i32_0 = arith.constant 1 : i32
    %1 = arith.muli %0, %c1_i32_0 : i32
    %c0_i32 = arith.constant 0 : i32
    %c0_i32_1 = arith.constant 0 : i32
    %c0_i32_2 = arith.constant 0 : i32
    return %c0_i32, %1, %c0_i32_1 : i32, i32, i32
  }
  func.func @transform_7(%arg0: i32) -> (i32, i32, i32) {
    %c0_i32 = arith.constant 0 : i32
    %c0_i32_0 = arith.constant 0 : i32
    %c0_i32_1 = arith.constant 0 : i32
    return %c0_i32, %arg0, %c0_i32_0 : i32, i32, i32
  }
  func.func @transform_8(%arg0: i32) -> (i32, i32, i32) {
    %c0_i32 = arith.constant 0 : i32
    %c0_i32_0 = arith.constant 0 : i32
    %c0_i32_1 = arith.constant 0 : i32
    return %c0_i32, %arg0, %c0_i32_0 : i32, i32, i32
  }
}

</mosaic_0001>

<llo_original>
// kernel: rawsr_degradation_pipeline_v2.1
$region0: #{rawsr_degradation_pipeline_v2.1}
  #allocation0 [shape = 'u32[]', space=smem, size = 0x4, offset = 0x4, fixed_abs, tag = 'smem constant byte address 0x4 - core index']
  #allocation1 [shape = 'u32[72,128]{1,0:T(1,128)}', space=vmem, size = 0x9000, scoped, tag = 'internal scratch']
  %s0 = inlined_call_operand.vmem [shape: f32[2], index: 0, kind: input, shape index: {}]
  %s1 = inlined_call_operand.vmem [shape: f32[24,32], index: 1, kind: input, shape index: {}]
  %s2 = inlined_call_operand.vmem [shape: f32[24,32], index: 2, kind: input, shape index: {}]
  %s3 = inlined_call_operand.vmem [shape: f32[4,48,256], index: 3, kind: input, shape index: {}, may-alias: {3,4}]
  %s4 = inlined_call_operand.vmem [shape: f32[4,48,256], index: 4, kind: input, shape index: {}, may-alias: {3,4}]
  %s5 = inlined_call_operand.vmem [shape: f32[4,48,256], index: 5, kind: input, shape index: {}, may-alias: {5,6}]
  %s6 = inlined_call_operand.vmem [shape: f32[4,48,256], index: 6, kind: input, shape index: {}, may-alias: {5,6}]
  %s7 = inlined_call_operand.vmem [shape: f32[4,16,128], index: 7, kind: input, shape index: {}]
  %s8 = inlined_call_operand.vmem [shape: f32[4,16,128], index: 8, kind: output, shape index: {}]
  %s9 = sld [smem:[#allocation0]]
  $region233: #{rawsr_degradation_pipeline_v2.1} parent=0
    _
  %s11 = ssub.s32 1, %s9
  %s12 = scalar_select 0, %s11, %s9
  $region1: #{rawsr_degradation_pipeline_v2.1} parent=0
    #allocation2 [shape = 'u8[512]{0}', space=smem, size = 0x200, scoped, tag = 'input window, operand 0, single buffered']
    #allocation3 [shape = 's32[2]{0}', space=sflag, size = 0x8, scoped, tag = 'scoped memory for rawsr_degradation_pipeline_v2.1']
    #allocation4 [shape = 'u8[131072]{0}', space=vmem, size = 0x20000, scoped, tag = 'input window, operand 3']
    #allocation5 [shape = 'u8[131072]{0}', space=vmem, size = 0x20000, scoped, tag = 'input window, operand 4']
    #allocation6 [shape = 'u8[131072]{0}', space=vmem, size = 0x20000, scoped, tag = 'input window, operand 5']
    #allocation7 [shape = 'u8[131072]{0}', space=vmem, size = 0x20000, scoped, tag = 'input window, operand 6']
    #allocation8 [shape = 'u8[32768]{0}', space=vmem, size = 0x8000, scoped, tag = 'input window, operand 7']
    #allocation9 [shape = 'u8[32768]{0}', space=vmem, size = 0x8000, scoped, tag = 'output window, operand 0']
    %13 = vsyncpa [#allocation3], 0
    loop: start=0, step=1, limit=4
    $region2: #{rawsr_degradation_pipeline_v2.1} parent=1 // loop_pre_header
      _
    $region3: #{rawsr_degradation_pipeline_v2.1} parent=1 // loop_header
      %s15 = sphi 0, %s19
      %p16 = scmp.ge.s32.totalorder %s15, 4
      %s23 = sphi 0, %s23
      %s25 = sphi 0, %s23
      %s26 = sphi 0, %s25
      %s40 = sphi 0, %s26
      %s44 = sphi 0, %s44
      %s46 = sphi 0, %s44
      %s47 = sphi 0, %s46
      %s61 = sphi 0, %s47
      %s65 = sphi 0, %s65
      %s67 = sphi 0, %s65
      %s68 = sphi 0, %s67
      %s82 = sphi 0, %s68
      %s88 = sphi 0, %s90
      %s91 = sphi 0, %s88
      %s92 = sphi 0, %s91
      %s108 = sphi 0, %s92
      %s116 = sphi 0, %s118
      %s119 = sphi 0, %s116
      %s120 = sphi 0, %s119
      %s136 = sphi 0, %s120
      %s142 = sphi 0, %s144
      %s145 = sphi 0, %s142
      %s146 = sphi 0, %s145
      %s162 = sphi 0, %s146
      %s170 = sphi 0, %s172
      %s173 = sphi 0, %s170
      %s174 = sphi 0, %s173
      %s190 = sphi 0, %s174
      %s196 = sphi 0, %s198
      %s199 = sphi 0, %s196
      %s200 = sphi 0, %s199
      %s216 = sphi 0, %s200
      %s222 = sphi 0, %s224
      %s225 = sphi 0, %s222
      %s226 = sphi 0, %s225
      %s242 = sphi 0, %s226
    $region4: #{rawsr_degradation_pipeline_v2.1} parent=1 // loop_header_branch
      %18 = sbr.rel (%p16) target = $region8
    $region5: #{rawsr_degradation_pipeline_v2.1} parent=1 // loop_body
      %s20 = ssub.s32 %s15, 1
      %s21 = ssub.s32 %s15, 2
      %s22 = sadd.s32 %s15, 1
      %s24 = sadd.s32 %s23, 1
      %p27 = scmp.eq.s32.totalorder %s15, 1
      %p28 = scmp.ne.s32.totalorder %s23, %s25
      %p29 = scmp.eq.s32.totalorder %s15, 0
      %p30 = por %p28, %p29
      %p31 = scmp.ne.s32.totalorder %s23, %s25
      %p32 = scmp.eq.s32.totalorder %s20, 1
      %p33 = por %p31, %p32
      %p34 = scmp.ne.s32.totalorder %s25, %s26
      %p35 = scmp.eq.s32.totalorder %s20, 0
      %p36 = por %p34, %p35
      %p37 = scmp.ne.s32.totalorder %s25, %s26
      %p38 = scmp.eq.s32.totalorder %s21, 1
      %p39 = por %p37, %p38
      %p41 = scmp.ne.s32.totalorder %s26, %s40
      %p42 = scmp.eq.s32.totalorder %s21, 0
      %p43 = por %p41, %p42
      %s45 = sadd.s32 %s44, 1
      %p48 = scmp.eq.s32.totalorder %s15, 1
      %p49 = scmp.ne.s32.totalorder %s44, %s46
      %p50 = scmp.eq.s32.totalorder %s15, 0
      %p51 = por %p49, %p50
      %p52 = scmp.ne.s32.totalorder %s44, %s46
      %p53 = scmp.eq.s32.totalorder %s20, 1
      %p54 = por %p52, %p53
      %p55 = scmp.ne.s32.totalorder %s46, %s47
      %p56 = scmp.eq.s32.totalorder %s20, 0
      %p57 = por %p55, %p56
      %p58 = scmp.ne.s32.totalorder %s46, %s47
      %p59 = scmp.eq.s32.totalorder %s21, 1
      %p60 = por %p58, %p59
      %p62 = scmp.ne.s32.totalorder %s47, %s61
      %p63 = scmp.eq.s32.totalorder %s21, 0
      %p64 = por %p62, %p63
      %s66 = sadd.s32 %s65, 1
      %p69 = scmp.eq.s32.totalorder %s15, 1
      %p70 = scmp.ne.s32.totalorder %s65, %s67
      %p71 = scmp.eq.s32.totalorder %s15, 0
      %p72 = por %p70, %p71
      %p73 = scmp.ne.s32.totalorder %s65, %s67
      %p74 = scmp.eq.s32.totalorder %s20, 1
      %p75 = por %p73, %p74
      %p76 = scmp.ne.s32.totalorder %s67, %s68
      %p77 = scmp.eq.s32.totalorder %s20, 0
      %p78 = por %p76, %p77
      %p79 = scmp.ne.s32.totalorder %s67, %s68
      %p80 = scmp.eq.s32.totalorder %s21, 1
      %p81 = por %p79, %p80
      %p83 = scmp.ne.s32.totalorder %s68, %s82
      %p84 = scmp.eq.s32.totalorder %s21, 0
      %p85 = por %p83, %p84
      %s86 = ssub.s32 %s15, %s22
      %p87 = scmp.eq.s32.totalorder %s86, 0
      %s89 = sadd.s32 %s88, 1
      %s90 = scalar_select %p87, %s88, %s89
      %p93 = pneg %p87
      %p94 = scmp.eq.s32.totalorder %s15, 1
      %p95 = por %p93, %p94
      %p96 = scmp.ne.s32.totalorder %s88, %s91
      %p97 = scmp.eq.s32.totalorder %s15, 0
      %p98 = por %p96, %p97
      %p99 = scmp.ne.s32.totalorder %s88, %s91
      %p100 = scmp.eq.s32.totalorder %s20, 1
      %p101 = por %p99, %p100
      %p102 = scmp.ne.s32.totalorder %s91, %s92
      %p103 = scmp.eq.s32.totalorder %s20, 0
      %p104 = por %p102, %p103
      %p105 = scmp.ne.s32.totalorder %s91, %s92
      %p106 = scmp.eq.s32.totalorder %s21, 1
      %p107 = por %p105, %p106
      %p109 = scmp.ne.s32.totalorder %s92, %s108
      %p110 = scmp.eq.s32.totalorder %s21, 0
      %p111 = por %p109, %p110
      %s112 = sadd.s32 %s15, 1
      %s113 = sadd.s32 %s22, 1
      %s114 = ssub.s32 %s112, %s113
      %p115 = scmp.eq.s32.totalorder %s114, 0
      %s117 = sadd.s32 %s116, 1
      %s118 = scalar_select %p115, %s116, %s117
      %p121 = pneg %p115
      %p122 = scmp.eq.s32.totalorder %s15, 1
      %p123 = por %p121, %p122
      %p124 = scmp.ne.s32.totalorder %s116, %s119
      %p125 = scmp.eq.s32.totalorder %s15, 0
      %p126 = por %p124, %p125
      %p127 = scmp.ne.s32.totalorder %s116, %s119
      %p128 = scmp.eq.s32.totalorder %s20, 1
      %p129 = por %p127, %p128
      %p130 = scmp.ne.s32.totalorder %s119, %s120
      %p131 = scmp.eq.s32.totalorder %s20, 0
      %p132 = por %p130, %p131
      %p133 = scmp.ne.s32.totalorder %s119, %s120
      %p134 = scmp.eq.s32.totalorder %s21, 1
      %p135 = por %p133, %p134
      %p137 = scmp.ne.s32.totalorder %s120, %s136
      %p138 = scmp.eq.s32.totalorder %s21, 0
      %p139 = por %p137, %p138
      %s140 = ssub.s32 %s15, %s22
      %p141 = scmp.eq.s32.totalorder %s140, 0
      %s143 = sadd.s32 %s142, 1
      %s144 = scalar_select %p141, %s142, %s143
      %p147 = pneg %p141
      %p148 = scmp.eq.s32.totalorder %s15, 1
      %p149 = por %p147, %p148
      %p150 = scmp.ne.s32.totalorder %s142, %s145
      %p151 = scmp.eq.s32.totalorder %s15, 0
      %p152 = por %p150, %p151
      %p153 = scmp.ne.s32.totalorder %s142, %s145
      %p154 = scmp.eq.s32.totalorder %s20, 1
      %p155 = por %p153, %p154
      %p156 = scmp.ne.s32.totalorder %s145, %s146
      %p157 = scmp.eq.s32.totalorder %s20, 0
      %p158 = por %p156, %p157
      %p159 = scmp.ne.s32.totalorder %s145, %s146
      %p160 = scmp.eq.s32.totalorder %s21, 1
      %p161 = por %p159, %p160
      %p163 = scmp.ne.s32.totalorder %s146, %s162
      %p164 = scmp.eq.s32.totalorder %s21, 0
      %p165 = por %p163, %p164
      %s166 = sadd.s32 %s15, 1
      %s167 = sadd.s32 %s22, 1
      %s168 = ssub.s32 %s166, %s167
      %p169 = scmp.eq.s32.totalorder %s168, 0
      %s171 = sadd.s32 %s170, 1
      %s172 = scalar_select %p169, %s170, %s171
      %p175 = pneg %p169
      %p176 = scmp.eq.s32.totalorder %s15, 1
      %p177 = por %p175, %p176
      %p178 = scmp.ne.s32.totalorder %s170, %s173
      %p179 = scmp.eq.s32.totalorder %s15, 0
      %p180 = por %p178, %p179
      %p181 = scmp.ne.s32.totalorder %s170, %s173
      %p182 = scmp.eq.s32.totalorder %s20, 1
      %p183 = por %p181, %p182
      %p184 = scmp.ne.s32.totalorder %s173, %s174
      %p185 = scmp.eq.s32.totalorder %s20, 0
      %p186 = por %p184, %p185
      %p187 = scmp.ne.s32.totalorder %s173, %s174
      %p188 = scmp.eq.s32.totalorder %s21, 1
      %p189 = por %p187, %p188
      %p191 = scmp.ne.s32.totalorder %s174, %s190
      %p192 = scmp.eq.s32.totalorder %s21, 0
      %p193 = por %p191, %p192
      %s194 = ssub.s32 %s15, %s22
      %p195 = scmp.eq.s32.totalorder %s194, 0
      %s197 = sadd.s32 %s196, 1
      %s198 = scalar_select %p195, %s196, %s197
      %p201 = pneg %p195
      %p202 = scmp.eq.s32.totalorder %s15, 1
      %p203 = por %p201, %p202
      %p204 = scmp.ne.s32.totalorder %s196, %s199
      %p205 = scmp.eq.s32.totalorder %s15, 0
      %p206 = por %p204, %p205
      %p207 = scmp.ne.s32.totalorder %s196, %s199
      %p208 = scmp.eq.s32.totalorder %s20, 1
      %p209 = por %p207, %p208
      %p210 = scmp.ne.s32.totalorder %s199, %s200
      %p211 = scmp.eq.s32.totalorder %s20, 0
      %p212 = por %p210, %p211
      %p213 = scmp.ne.s32.totalorder %s199, %s200
      %p214 = scmp.eq.s32.totalorder %s21, 1
      %p215 = por %p213, %p214
      %p217 = scmp.ne.s32.totalorder %s200, %s216
      %p218 = scmp.eq.s32.totalorder %s21, 0
      %p219 = por %p217, %p218
      %s220 = ssub.s32 %s15, %s22
      %p221 = scmp.eq.s32.totalorder %s220, 0
      %s223 = sadd.s32 %s222, 1
      %s224 = scalar_select %p221, %s222, %s223
      %p227 = pneg %p221
      %p228 = scmp.eq.s32.totalorder %s15, 1
      %p229 = por %p227, %p228
      %p230 = scmp.ne.s32.totalorder %s222, %s225
      %p231 = scmp.eq.s32.totalorder %s15, 0
      %p232 = por %p230, %p231
      %p233 = scmp.ne.s32.totalorder %s222, %s225
      %p234 = scmp.eq.s32.totalorder %s20, 1
      %p235 = por %p233, %p234
      %p236 = scmp.ne.s32.totalorder %s225, %s226
      %p237 = scmp.eq.s32.totalorder %s20, 0
      %p238 = por %p236, %p237
      %p239 = scmp.ne.s32.totalorder %s225, %s226
      %p240 = scmp.eq.s32.totalorder %s21, 1
      %p241 = por %p239, %p240
      %p243 = scmp.ne.s32.totalorder %s226, %s242
      %p244 = scmp.eq.s32.totalorder %s21, 0
      %p245 = por %p243, %p244
      %p246 = scmp.le.s32.totalorder 1, %s15
      %p247 = scmp.lt.s32.totalorder %s15, 3
      %p248 = pnand %p246, %p247
      %p249 = pneg %p248
      // Predicated region
      $region9: #{rawsr_degradation_pipeline_v2.1} parent=5 // pred_check
        _
      $region10: #{rawsr_degradation_pipeline_v2.1} parent=5 // pred_check_branch
        %251 = sbr.rel (%p248) target = $region12
      $region11: #{rawsr_degradation_pipeline_v2.1} parent=5 // pred_region
        %s252 = ssub.s32 %s15, 1
        // Predicated region
        $region13: #{rawsr_degradation_pipeline_v2.1} parent=11 // pred_check
          %p253 = pneg %p36
        $region14: #{rawsr_degradation_pipeline_v2.1} parent=11 // pred_check_branch
          %255 = sbr.rel (%p253) target = $region16
        $region15: #{rawsr_degradation_pipeline_v2.1} parent=11 // pred_region
          %257 = vsyncadd [#allocation3], 0
          %s259 = sshll.u32 %s0, 4
          %s260 = int_to_ptr.vmem [resolvable:$true] %s259
          %262 = dma.vmem_to_smem %s260, 16, [#allocation2], [#allocation3]
        $region16: #{rawsr_degradation_pipeline_v2.1} parent=11 // pred_fallthru
          _
        // Predicated region
        $region17: #{rawsr_degradation_pipeline_v2.1} parent=11 // pred_check
          %p263 = pneg %p57
        $region18: #{rawsr_degradation_pipeline_v2.1} parent=11 // pred_check_branch
          %265 = sbr.rel (%p263) target = $region20
        $region19: #{rawsr_degradation_pipeline_v2.1} parent=11 // pred_region
          _
        $region20: #{rawsr_degradation_pipeline_v2.1} parent=11 // pred_fallthru
          _
        // Predicated region
        $region21: #{rawsr_degradation_pipeline_v2.1} parent=11 // pred_check
          %p266 = pneg %p78
        $region22: #{rawsr_degradation_pipeline_v2.1} parent=11 // pred_check_branch
          %268 = sbr.rel (%p266) target = $region24
        $region23: #{rawsr_degradation_pipeline_v2.1} parent=11 // pred_region
          _
        $region24: #{rawsr_degradation_pipeline_v2.1} parent=11 // pred_fallthru
          _
      $region12: #{rawsr_degradation_pipeline_v2.1} parent=5 // pred_fallthru
        _
      %p269 = scmp.lt.s32.totalorder %s15, 2
      // Predicated region
      $region25: #{rawsr_degradation_pipeline_v2.1} parent=5 // pred_check
        %p270 = pneg %p269
      $region26: #{rawsr_degradation_pipeline_v2.1} parent=5 // pred_check_branch
        %272 = sbr.rel (%p270) target = $region28
      $region27: #{rawsr_degradation_pipeline_v2.1} parent=5 // pred_region
        // Predicated region
        $region29: #{rawsr_degradation_pipeline_v2.1} parent=27 // pred_check
          %p273 = pneg %p98
        $region30: #{rawsr_degradation_pipeline_v2.1} parent=27 // pred_check_branch
          %275 = sbr.rel (%p273) target = $region32
        $region31: #{rawsr_degradation_pipeline_v2.1} parent=27 // pred_region
          %s276 = sand.u32 %s88, 1
          %s277 = sand.u32 %s88, 1
          %s278 = smul.addr %s277, 128
          %s279 = scalar_lea.vmem [#allocation4], %s278
          %s280 = smul.u32 2, %s15
          %s281 = smul.addr %s280, 2
          %s282 = smul.addr %s281, 8
          %s283 = scalar_lea.vmem %s3, %s282
          // Predicated region
          $region33: #{rawsr_degradation_pipeline_v2.1} parent=31 // pred_check
            _
          $region34: #{rawsr_degradation_pipeline_v2.1} parent=31 // pred_check_branch
            %285 = sbr.rel (0) target = $region36
          $region35: #{rawsr_degradation_pipeline_v2.1} parent=31 // pred_region
            // Predicated region
            $region37: #{rawsr_degradation_pipeline_v2.1} parent=35 // pred_check
              _
            $region38: #{rawsr_degradation_pipeline_v2.1} parent=35 // pred_check_branch
              %287 = sbr.rel (0) target = $region40
            $region39: #{rawsr_degradation_pipeline_v2.1} parent=35 // pred_region
              loop: start=0, step=1, limit=1
              $region41: #{rawsr_degradation_pipeline_v2.1} parent=39 // loop_pre_header
                _
              $region42: #{rawsr_degradation_pipeline_v2.1} parent=39 // loop_header
                %s289 = sphi 0, %s293
                %p290 = scmp.ge.s32.totalorder %s289, 1
                %s294 = sphi %s283, %s283
                %s295 = sphi %s279, %s279
              $region43: #{rawsr_degradation_pipeline_v2.1} parent=39 // loop_header_branch
                %292 = sbr.rel (%p290) target = $region47
              $region44: #{rawsr_degradation_pipeline_v2.1} parent=39 // loop_body
                %v296 = vld [vmem:[%s294] sm:$0xff]
                %297 = vst [vmem:[%s295] sm:$0xff] %v296
                %v298 = vld [vmem:[%s294 + $0x8] sm:$0xff]
                %299 = vst [vmem:[%s295 + $0x8] sm:$0xff] %v298
                %v300 = vld [vmem:[%s294 + $0x10] sm:$0xff]
                %301 = vst [vmem:[%s295 + $0x10] sm:$0xff] %v300
                %v302 = vld [vmem:[%s294 + $0x18] sm:$0xff]
                %303 = vst [vmem:[%s295 + $0x18] sm:$0xff] %v302
                %v304 = vld [vmem:[%s294 + $0x60] sm:$0xff]
                %305 = vst [vmem:[%s295 + $0x20] sm:$0xff] %v304
                %v306 = vld [vmem:[%s294 + $0x68] sm:$0xff]
                %307 = vst [vmem:[%s295 + $0x28] sm:$0xff] %v306
                %v308 = vld [vmem:[%s294 + $0x70] sm:$0xff]
                %309 = vst [vmem:[%s295 + $0x30] sm:$0xff] %v308
                %v310 = vld [vmem:[%s294 + $0x78] sm:$0xff]
                %311 = vst [vmem:[%s295 + $0x38] sm:$0xff] %v310
                %v312 = vld [vmem:[%s294 + $0xc0] sm:$0xff]
                %313 = vst [vmem:[%s295 + $0x40] sm:$0xff] %v312
                %v314 = vld [vmem:[%s294 + $0xc8] sm:$0xff]
                %315 = vst [vmem:[%s295 + $0x48] sm:$0xff] %v314
                %v316 = vld [vmem:[%s294 + $0xd0] sm:$0xff]
                %317 = vst [vmem:[%s295 + $0x50] sm:$0xff] %v316
                %v318 = vld [vmem:[%s294 + $0xd8] sm:$0xff]
                %319 = vst [vmem:[%s295 + $0x58] sm:$0xff] %v318
                %v320 = vld [vmem:[%s294 + $0x120] sm:$0xff]
                %321 = vst [vmem:[%s295 + $0x60] sm:$0xff] %v320
                %v322 = vld [vmem:[%s294 + $0x128] sm:$0xff]
                %323 = vst [vmem:[%s295 + $0x68] sm:$0xff] %v322
                %v324 = vld [vmem:[%s294 + $0x130] sm:$0xff]
                %325 = vst [vmem:[%s295 + $0x70] sm:$0xff] %v324
                %v326 = vld [vmem:[%s294 + $0x138] sm:$0xff]
                %327 = vst [vmem:[%s295 + $0x78] sm:$0xff] %v326
              $region45: #{rawsr_degradation_pipeline_v2.1} parent=39 // loop_footer
                %s293 = sadd.s32 1, %s289
              $region46: #{rawsr_degradation_pipeline_v2.1} parent=39 // loop_footer_branch
                %288 = sbr.rel target = $region42
              $region47: #{rawsr_degradation_pipeline_v2.1} parent=39 // loop_exit
                _
            $region40: #{rawsr_degradation_pipeline_v2.1} parent=35 // pred_fallthru
              _
            // Predicated region
            $region48: #{rawsr_degradation_pipeline_v2.1} parent=35 // pred_check
              _
            $region49: #{rawsr_degradation_pipeline_v2.1} parent=35 // pred_check_branch
              %329 = sbr.rel target = $region51
            $region50: #{rawsr_degradation_pipeline_v2.1} parent=35 // pred_region
              _
            $region51: #{rawsr_degradation_pipeline_v2.1} parent=35 // pred_fallthru
              _
          $region36: #{rawsr_degradation_pipeline_v2.1} parent=31 // pred_fallthru
            _
          %330 = vnop
        $region32: #{rawsr_degradation_pipeline_v2.1} parent=27 // pred_fallthru
          _
        // Predicated region
        $region52: #{rawsr_degradation_pipeline_v2.1} parent=27 // pred_check
          %p331 = pneg %p126
        $region53: #{rawsr_degradation_pipeline_v2.1} parent=27 // pred_check_branch
          %333 = sbr.rel (%p331) target = $region55
        $region54: #{rawsr_degradation_pipeline_v2.1} parent=27 // pred_region
          %s334 = sand.u32 %s116, 1
          %s335 = sand.u32 %s116, 1
          %s336 = smul.addr %s335, 128
          %s337 = scalar_lea.vmem [#allocation5], %s336
          %s338 = sadd.s32 %s15, 1
          %s339 = smul.u32 2, %s338
          %s340 = smul.addr %s339, 2
          %s341 = smul.addr %s340, 8
          %s342 = scalar_lea.vmem %s4, %s341
          // Predicated region
          $region56: #{rawsr_degradation_pipeline_v2.1} parent=54 // pred_check
            _
          $region57: #{rawsr_degradation_pipeline_v2.1} parent=54 // pred_check_branch
            %344 = sbr.rel (0) target = $region59
          $region58: #{rawsr_degradation_pipeline_v2.1} parent=54 // pred_region
            // Predicated region
            $region60: #{rawsr_degradation_pipeline_v2.1} parent=58 // pred_check
              _
            $region61: #{rawsr_degradation_pipeline_v2.1} parent=58 // pred_check_branch
              %346 = sbr.rel (0) target = $region63
            $region62: #{rawsr_degradation_pipeline_v2.1} parent=58 // pred_region
              loop: start=0, step=1, limit=1
              $region64: #{rawsr_degradation_pipeline_v2.1} parent=62 // loop_pre_header
                _
              $region65: #{rawsr_degradation_pipeline_v2.1} parent=62 // loop_header
                %s348 = sphi 0, %s352
                %p349 = scmp.ge.s32.totalorder %s348, 1
                %s353 = sphi %s342, %s342
                %s354 = sphi %s337, %s337
              $region66: #{rawsr_degradation_pipeline_v2.1} parent=62 // loop_header_branch
                %351 = sbr.rel (%p349) target = $region70
              $region67: #{rawsr_degradation_pipeline_v2.1} parent=62 // loop_body
                %v355 = vld [vmem:[%s353] sm:$0xff]
                %356 = vst [vmem:[%s354] sm:$0xff] %v355
                %v357 = vld [vmem:[%s353 + $0x8] sm:$0xff]
                %358 = vst [vmem:[%s354 + $0x8] sm:$0xff] %v357
                %v359 = vld [vmem:[%s353 + $0x10] sm:$0xff]
                %360 = vst [vmem:[%s354 + $0x10] sm:$0xff] %v359
                %v361 = vld [vmem:[%s353 + $0x18] sm:$0xff]
                %362 = vst [vmem:[%s354 + $0x18] sm:$0xff] %v361
                %v363 = vld [vmem:[%s353 + $0x60] sm:$0xff]
                %364 = vst [vmem:[%s354 + $0x20] sm:$0xff] %v363
                %v365 = vld [vmem:[%s353 + $0x68] sm:$0xff]
                %366 = vst [vmem:[%s354 + $0x28] sm:$0xff] %v365
                %v367 = vld [vmem:[%s353 + $0x70] sm:$0xff]
                %368 = vst [vmem:[%s354 + $0x30] sm:$0xff] %v367
                %v369 = vld [vmem:[%s353 + $0x78] sm:$0xff]
                %370 = vst [vmem:[%s354 + $0x38] sm:$0xff] %v369
                %v371 = vld [vmem:[%s353 + $0xc0] sm:$0xff]
                %372 = vst [vmem:[%s354 + $0x40] sm:$0xff] %v371
                %v373 = vld [vmem:[%s353 + $0xc8] sm:$0xff]
                %374 = vst [vmem:[%s354 + $0x48] sm:$0xff] %v373
                %v375 = vld [vmem:[%s353 + $0xd0] sm:$0xff]
                %376 = vst [vmem:[%s354 + $0x50] sm:$0xff] %v375
                %v377 = vld [vmem:[%s353 + $0xd8] sm:$0xff]
                %378 = vst [vmem:[%s354 + $0x58] sm:$0xff] %v377
                %v379 = vld [vmem:[%s353 + $0x120] sm:$0xff]
                %380 = vst [vmem:[%s354 + $0x60] sm:$0xff] %v379
                %v381 = vld [vmem:[%s353 + $0x128] sm:$0xff]
                %382 = vst [vmem:[%s354 + $0x68] sm:$0xff] %v381
                %v383 = vld [vmem:[%s353 + $0x130] sm:$0xff]
                %384 = vst [vmem:[%s354 + $0x70] sm:$0xff] %v383
                %v385 = vld [vmem:[%s353 + $0x138] sm:$0xff]
                %386 = vst [vmem:[%s354 + $0x78] sm:$0xff] %v385
              $region68: #{rawsr_degradation_pipeline_v2.1} parent=62 // loop_footer
                %s352 = sadd.s32 1, %s348
              $region69: #{rawsr_degradation_pipeline_v2.1} parent=62 // loop_footer_branch
                %347 = sbr.rel target = $region65
              $region70: #{rawsr_degradation_pipeline_v2.1} parent=62 // loop_exit
                _
            $region63: #{rawsr_degradation_pipeline_v2.1} parent=58 // pred_fallthru
              _
            // Predicated region
            $region71: #{rawsr_degradation_pipeline_v2.1} parent=58 // pred_check
              _
            $region72: #{rawsr_degradation_pipeline_v2.1} parent=58 // pred_check_branch
              %388 = sbr.rel target = $region74
            $region73: #{rawsr_degradation_pipeline_v2.1} parent=58 // pred_region
              _
            $region74: #{rawsr_degradation_pipeline_v2.1} parent=58 // pred_fallthru
              _
          $region59: #{rawsr_degradation_pipeline_v2.1} parent=54 // pred_fallthru
            _
          %389 = vnop
        $region55: #{rawsr_degradation_pipeline_v2.1} parent=27 // pred_fallthru
          _
        // Predicated region
        $region75: #{rawsr_degradation_pipeline_v2.1} parent=27 // pred_check
          %p390 = pneg %p152
        $region76: #{rawsr_degradation_pipeline_v2.1} parent=27 // pred_check_branch
          %392 = sbr.rel (%p390) target = $region78
        $region77: #{rawsr_degradation_pipeline_v2.1} parent=27 // pred_region
          %s393 = sand.u32 %s142, 1
          %s394 = sand.u32 %s142, 1
          %s395 = smul.addr %s394, 128
          %s396 = scalar_lea.vmem [#allocation6], %s395
          %s397 = smul.u32 2, %s15
          %s398 = smul.addr %s397, 2
          %s399 = smul.addr %s398, 8
          %s400 = scalar_lea.vmem %s5, %s399
          // Predicated region
          $region79: #{rawsr_degradation_pipeline_v2.1} parent=77 // pred_check
            _
          $region80: #{rawsr_degradation_pipeline_v2.1} parent=77 // pred_check_branch
            %402 = sbr.rel (0) target = $region82
          $region81: #{rawsr_degradation_pipeline_v2.1} parent=77 // pred_region
            // Predicated region
            $region83: #{rawsr_degradation_pipeline_v2.1} parent=81 // pred_check
              _
            $region84: #{rawsr_degradation_pipeline_v2.1} parent=81 // pred_check_branch
              %404 = sbr.rel (0) target = $region86
            $region85: #{rawsr_degradation_pipeline_v2.1} parent=81 // pred_region
              loop: start=0, step=1, limit=1
              $region87: #{rawsr_degradation_pipeline_v2.1} parent=85 // loop_pre_header
                _
              $region88: #{rawsr_degradation_pipeline_v2.1} parent=85 // loop_header
                %s406 = sphi 0, %s410
                %p407 = scmp.ge.s32.totalorder %s406, 1
                %s411 = sphi %s400, %s400
                %s412 = sphi %s396, %s396
              $region89: #{rawsr_degradation_pipeline_v2.1} parent=85 // loop_header_branch
                %409 = sbr.rel (%p407) target = $region93
              $region90: #{rawsr_degradation_pipeline_v2.1} parent=85 // loop_body
                %v413 = vld [vmem:[%s411] sm:$0xff]
                %414 = vst [vmem:[%s412] sm:$0xff] %v413
                %v415 = vld [vmem:[%s411 + $0x8] sm:$0xff]
                %416 = vst [vmem:[%s412 + $0x8] sm:$0xff] %v415
                %v417 = vld [vmem:[%s411 + $0x10] sm:$0xff]
                %418 = vst [vmem:[%s412 + $0x10] sm:$0xff] %v417
                %v419 = vld [vmem:[%s411 + $0x18] sm:$0xff]
                %420 = vst [vmem:[%s412 + $0x18] sm:$0xff] %v419
                %v421 = vld [vmem:[%s411 + $0x60] sm:$0xff]
                %422 = vst [vmem:[%s412 + $0x20] sm:$0xff] %v421
                %v423 = vld [vmem:[%s411 + $0x68] sm:$0xff]
                %424 = vst [vmem:[%s412 + $0x28] sm:$0xff] %v423
                %v425 = vld [vmem:[%s411 + $0x70] sm:$0xff]
                %426 = vst [vmem:[%s412 + $0x30] sm:$0xff] %v425
                %v427 = vld [vmem:[%s411 + $0x78] sm:$0xff]
                %428 = vst [vmem:[%s412 + $0x38] sm:$0xff] %v427
                %v429 = vld [vmem:[%s411 + $0xc0] sm:$0xff]
                %430 = vst [vmem:[%s412 + $0x40] sm:$0xff] %v429
                %v431 = vld [vmem:[%s411 + $0xc8] sm:$0xff]
                %432 = vst [vmem:[%s412 + $0x48] sm:$0xff] %v431
                %v433 = vld [vmem:[%s411 + $0xd0] sm:$0xff]
                %434 = vst [vmem:[%s412 + $0x50] sm:$0xff] %v433
                %v435 = vld [vmem:[%s411 + $0xd8] sm:$0xff]
                %436 = vst [vmem:[%s412 + $0x58] sm:$0xff] %v435
                %v437 = vld [vmem:[%s411 + $0x120] sm:$0xff]
                %438 = vst [vmem:[%s412 + $0x60] sm:$0xff] %v437
                %v439 = vld [vmem:[%s411 + $0x128] sm:$0xff]
                %440 = vst [vmem:[%s412 + $0x68] sm:$0xff] %v439
                %v441 = vld [vmem:[%s411 + $0x130] sm:$0xff]
                %442 = vst [vmem:[%s412 + $0x70] sm:$0xff] %v441
                %v443 = vld [vmem:[%s411 + $0x138] sm:$0xff]
                %444 = vst [vmem:[%s412 + $0x78] sm:$0xff] %v443
              $region91: #{rawsr_degradation_pipeline_v2.1} parent=85 // loop_footer
                %s410 = sadd.s32 1, %s406
              $region92: #{rawsr_degradation_pipeline_v2.1} parent=85 // loop_footer_branch
                %405 = sbr.rel target = $region88
              $region93: #{rawsr_degradation_pipeline_v2.1} parent=85 // loop_exit
                _
            $region86: #{rawsr_degradation_pipeline_v2.1} parent=81 // pred_fallthru
              _
            // Predicated region
            $region94: #{rawsr_degradation_pipeline_v2.1} parent=81 // pred_check
              _
            $region95: #{rawsr_degradation_pipeline_v2.1} parent=81 // pred_check_branch
              %446 = sbr.rel target = $region97
            $region96: #{rawsr_degradation_pipeline_v2.1} parent=81 // pred_region
              _
            $region97: #{rawsr_degradation_pipeline_v2.1} parent=81 // pred_fallthru
              _
          $region82: #{rawsr_degradation_pipeline_v2.1} parent=77 // pred_fallthru
            _
          %447 = vnop
        $region78: #{rawsr_degradation_pipeline_v2.1} parent=27 // pred_fallthru
          _
        // Predicated region
        $region98: #{rawsr_degradation_pipeline_v2.1} parent=27 // pred_check
          %p448 = pneg %p180
        $region99: #{rawsr_degradation_pipeline_v2.1} parent=27 // pred_check_branch
          %450 = sbr.rel (%p448) target = $region101
        $region100: #{rawsr_degradation_pipeline_v2.1} parent=27 // pred_region
          %s451 = sand.u32 %s170, 1
          %s452 = sand.u32 %s170, 1
          %s453 = smul.addr %s452, 128
          %s454 = scalar_lea.vmem [#allocation7], %s453
          %s455 = sadd.s32 %s15, 1
          %s456 = smul.u32 2, %s455
          %s457 = smul.addr %s456, 2
          %s458 = smul.addr %s457, 8
          %s459 = scalar_lea.vmem %s6, %s458
          // Predicated region
          $region102: #{rawsr_degradation_pipeline_v2.1} parent=100 // pred_check
            _
          $region103: #{rawsr_degradation_pipeline_v2.1} parent=100 // pred_check_branch
            %461 = sbr.rel (0) target = $region105
          $region104: #{rawsr_degradation_pipeline_v2.1} parent=100 // pred_region
            // Predicated region
            $region106: #{rawsr_degradation_pipeline_v2.1} parent=104 // pred_check
              _
            $region107: #{rawsr_degradation_pipeline_v2.1} parent=104 // pred_check_branch
              %463 = sbr.rel (0) target = $region109
            $region108: #{rawsr_degradation_pipeline_v2.1} parent=104 // pred_region
              loop: start=0, step=1, limit=1
              $region110: #{rawsr_degradation_pipeline_v2.1} parent=108 // loop_pre_header
                _
              $region111: #{rawsr_degradation_pipeline_v2.1} parent=108 // loop_header
                %s465 = sphi 0, %s469
                %p466 = scmp.ge.s32.totalorder %s465, 1
                %s470 = sphi %s459, %s459
                %s471 = sphi %s454, %s454
              $region112: #{rawsr_degradation_pipeline_v2.1} parent=108 // loop_header_branch
                %468 = sbr.rel (%p466) target = $region116
              $region113: #{rawsr_degradation_pipeline_v2.1} parent=108 // loop_body
                %v472 = vld [vmem:[%s470] sm:$0xff]
                %473 = vst [vmem:[%s471] sm:$0xff] %v472
                %v474 = vld [vmem:[%s470 + $0x8] sm:$0xff]
                %475 = vst [vmem:[%s471 + $0x8] sm:$0xff] %v474
                %v476 = vld [vmem:[%s470 + $0x10] sm:$0xff]
                %477 = vst [vmem:[%s471 + $0x10] sm:$0xff] %v476
                %v478 = vld [vmem:[%s470 + $0x18] sm:$0xff]
                %479 = vst [vmem:[%s471 + $0x18] sm:$0xff] %v478
                %v480 = vld [vmem:[%s470 + $0x60] sm:$0xff]
                %481 = vst [vmem:[%s471 + $0x20] sm:$0xff] %v480
                %v482 = vld [vmem:[%s470 + $0x68] sm:$0xff]
                %483 = vst [vmem:[%s471 + $0x28] sm:$0xff] %v482
                %v484 = vld [vmem:[%s470 + $0x70] sm:$0xff]
                %485 = vst [vmem:[%s471 + $0x30] sm:$0xff] %v484
                %v486 = vld [vmem:[%s470 + $0x78] sm:$0xff]
                %487 = vst [vmem:[%s471 + $0x38] sm:$0xff] %v486
                %v488 = vld [vmem:[%s470 + $0xc0] sm:$0xff]
                %489 = vst [vmem:[%s471 + $0x40] sm:$0xff] %v488
                %v490 = vld [vmem:[%s470 + $0xc8] sm:$0xff]
                %491 = vst [vmem:[%s471 + $0x48] sm:$0xff] %v490
                %v492 = vld [vmem:[%s470 + $0xd0] sm:$0xff]
                %493 = vst [vmem:[%s471 + $0x50] sm:$0xff] %v492
                %v494 = vld [vmem:[%s470 + $0xd8] sm:$0xff]
                %495 = vst [vmem:[%s471 + $0x58] sm:$0xff] %v494
                %v496 = vld [vmem:[%s470 + $0x120] sm:$0xff]
                %497 = vst [vmem:[%s471 + $0x60] sm:$0xff] %v496
                %v498 = vld [vmem:[%s470 + $0x128] sm:$0xff]
                %499 = vst [vmem:[%s471 + $0x68] sm:$0xff] %v498
                %v500 = vld [vmem:[%s470 + $0x130] sm:$0xff]
                %501 = vst [vmem:[%s471 + $0x70] sm:$0xff] %v500
                %v502 = vld [vmem:[%s470 + $0x138] sm:$0xff]
                %503 = vst [vmem:[%s471 + $0x78] sm:$0xff] %v502
              $region114: #{rawsr_degradation_pipeline_v2.1} parent=108 // loop_footer
                %s469 = sadd.s32 1, %s465
              $region115: #{rawsr_degradation_pipeline_v2.1} parent=108 // loop_footer_branch
                %464 = sbr.rel target = $region111
              $region116: #{rawsr_degradation_pipeline_v2.1} parent=108 // loop_exit
                _
            $region109: #{rawsr_degradation_pipeline_v2.1} parent=104 // pred_fallthru
              _
            // Predicated region
            $region117: #{rawsr_degradation_pipeline_v2.1} parent=104 // pred_check
              _
            $region118: #{rawsr_degradation_pipeline_v2.1} parent=104 // pred_check_branch
              %505 = sbr.rel target = $region120
            $region119: #{rawsr_degradation_pipeline_v2.1} parent=104 // pred_region
              _
            $region120: #{rawsr_degradation_pipeline_v2.1} parent=104 // pred_fallthru
              _
          $region105: #{rawsr_degradation_pipeline_v2.1} parent=100 // pred_fallthru
            _
          %506 = vnop
        $region101: #{rawsr_degradation_pipeline_v2.1} parent=27 // pred_fallthru
          _
        // Predicated region
        $region121: #{rawsr_degradation_pipeline_v2.1} parent=27 // pred_check
          %p507 = pneg %p206
        $region122: #{rawsr_degradation_pipeline_v2.1} parent=27 // pred_check_branch
          %509 = sbr.rel (%p507) target = $region124
        $region123: #{rawsr_degradation_pipeline_v2.1} parent=27 // pred_region
          %s510 = sand.u32 %s196, 1
          %s511 = sand.u32 %s196, 1
          %s512 = smul.addr %s511, 32
          %s513 = scalar_lea.vmem [#allocation8], %s512
          %s514 = smul.addr %s15, 8
          %s515 = scalar_lea.vmem %s7, %s514
          // Predicated region
          $region125: #{rawsr_degradation_pipeline_v2.1} parent=123 // pred_check
            _
          $region126: #{rawsr_degradation_pipeline_v2.1} parent=123 // pred_check_branch
            %517 = sbr.rel (0) target = $region128
          $region127: #{rawsr_degradation_pipeline_v2.1} parent=123 // pred_region
            // Predicated region
            $region129: #{rawsr_degradation_pipeline_v2.1} parent=127 // pred_check
              _
            $region130: #{rawsr_degradation_pipeline_v2.1} parent=127 // pred_check_branch
              %519 = sbr.rel (0) target = $region132
            $region131: #{rawsr_degradation_pipeline_v2.1} parent=127 // pred_region
              // Predicated region
              $region144: #{rawsr_degradation_pipeline_v2.1} parent=131 // pred_check
                _
              $region145: #{rawsr_degradation_pipeline_v2.1} parent=131 // pred_check_branch
                %541 = sbr.rel (0) target = $region147
              $region146: #{rawsr_degradation_pipeline_v2.1} parent=131 // pred_region
                loop: start=0, step=1, limit=1
                $region148: #{rawsr_degradation_pipeline_v2.1} parent=146 // loop_pre_header
                  _
                $region149: #{rawsr_degradation_pipeline_v2.1} parent=146 // loop_header
                  %s543 = sphi 0, %s547
                  %p544 = scmp.ge.s32.totalorder %s543, 1
                  %s548 = sphi %s515, %s515
                  %s549 = sphi %s513, %s513
                $region150: #{rawsr_degradation_pipeline_v2.1} parent=146 // loop_header_branch
                  %546 = sbr.rel (%p544) target = $region154
                $region151: #{rawsr_degradation_pipeline_v2.1} parent=146 // loop_body
                  %v550 = vld [vmem:[%s548] sm:$0xff]
                  %551 = vst [vmem:[%s549] sm:$0xff] %v550
                  %v552 = vld [vmem:[%s548 + $0x10] sm:$0xff]
                  %553 = vst [vmem:[%s549 + $0x8] sm:$0xff] %v552
                  %v554 = vld [vmem:[%s548 + $0x20] sm:$0xff]
                  %555 = vst [vmem:[%s549 + $0x10] sm:$0xff] %v554
                  %v556 = vld [vmem:[%s548 + $0x30] sm:$0xff]
                  %557 = vst [vmem:[%s549 + $0x18] sm:$0xff] %v556
                $region152: #{rawsr_degradation_pipeline_v2.1} parent=146 // loop_footer
                  %s547 = sadd.s32 1, %s543
                $region153: #{rawsr_degradation_pipeline_v2.1} parent=146 // loop_footer_branch
                  %542 = sbr.rel target = $region149
                $region154: #{rawsr_degradation_pipeline_v2.1} parent=146 // loop_exit
                  _
              $region147: #{rawsr_degradation_pipeline_v2.1} parent=131 // pred_fallthru
                _
              // Predicated region
              $region155: #{rawsr_degradation_pipeline_v2.1} parent=131 // pred_check
                _
              $region156: #{rawsr_degradation_pipeline_v2.1} parent=131 // pred_check_branch
                %559 = sbr.rel target = $region158
              $region157: #{rawsr_degradation_pipeline_v2.1} parent=131 // pred_region
                _
              $region158: #{rawsr_degradation_pipeline_v2.1} parent=131 // pred_fallthru
                _
            $region132: #{rawsr_degradation_pipeline_v2.1} parent=127 // pred_fallthru
              _
            // Predicated region
            $region133: #{rawsr_degradation_pipeline_v2.1} parent=127 // pred_check
              _
            $region134: #{rawsr_degradation_pipeline_v2.1} parent=127 // pred_check_branch
              %521 = sbr.rel target = $region136
            $region135: #{rawsr_degradation_pipeline_v2.1} parent=127 // pred_region
              %s523 = ssub.s32 256, 1
              loop: start=0, step=1, limit=1
              $region137: #{rawsr_degradation_pipeline_v2.1} parent=135 // loop_pre_header
                _
              $region138: #{rawsr_degradation_pipeline_v2.1} parent=135 // loop_header
                %s525 = sphi 0, %s529
                %p526 = scmp.ge.s32.totalorder %s525, 1
                %s530 = sphi %s515, %s515
                %s531 = sphi %s513, %s513
              $region139: #{rawsr_degradation_pipeline_v2.1} parent=135 // loop_header_branch
                %528 = sbr.rel (%p526) target = $region143
              $region140: #{rawsr_degradation_pipeline_v2.1} parent=135 // loop_body
                %v532 = vld [vmem:[%s530] sm:%s523]
                %533 = vst [vmem:[%s531] sm:%s523] %v532
                %v534 = vld [vmem:[%s530 + $0x10] sm:%s523]
                %535 = vst [vmem:[%s531 + $0x8] sm:%s523] %v534
                %v536 = vld [vmem:[%s530 + $0x20] sm:%s523]
                %537 = vst [vmem:[%s531 + $0x10] sm:%s523] %v536
                %v538 = vld [vmem:[%s530 + $0x30] sm:%s523]
                %539 = vst [vmem:[%s531 + $0x18] sm:%s523] %v538
              $region141: #{rawsr_degradation_pipeline_v2.1} parent=135 // loop_footer
                %s529 = sadd.s32 1, %s525
              $region142: #{rawsr_degradation_pipeline_v2.1} parent=135 // loop_footer_branch
                %524 = sbr.rel target = $region138
              $region143: #{rawsr_degradation_pipeline_v2.1} parent=135 // loop_exit
                _
            $region136: #{rawsr_degradation_pipeline_v2.1} parent=127 // pred_fallthru
              _
          $region128: #{rawsr_degradation_pipeline_v2.1} parent=123 // pred_fallthru
            _
          %560 = vnop
        $region124: #{rawsr_degradation_pipeline_v2.1} parent=27 // pred_fallthru
          _
      $region28: #{rawsr_degradation_pipeline_v2.1} parent=5 // pred_fallthru
        _
      %p561 = scmp.le.s32.totalorder 1, %s15
      %p562 = scmp.lt.s32.totalorder %s15, 3
      %p563 = pnand %p561, %p562
      %p564 = pneg %p563
      // Predicated region
      $region159: #{rawsr_degradation_pipeline_v2.1} parent=5 // pred_check
        _
      $region160: #{rawsr_degradation_pipeline_v2.1} parent=5 // pred_check_branch
        %566 = sbr.rel (%p563) target = $region162
      $region161: #{rawsr_degradation_pipeline_v2.1} parent=5 // pred_region
        %s567 = ssub.s32 %s15, 1
        // Predicated region
        $region163: #{rawsr_degradation_pipeline_v2.1} parent=161 // pred_check
          %p568 = pneg %p36
        $region164: #{rawsr_degradation_pipeline_v2.1} parent=161 // pred_check_branch
          %570 = sbr.rel (%p568) target = $region166
        $region165: #{rawsr_degradation_pipeline_v2.1} parent=161 // pred_region
          %572 = dma.done [#allocation3], 16
        $region166: #{rawsr_degradation_pipeline_v2.1} parent=161 // pred_fallthru
          _
        %s573 = sand.u32 %s91, 1
        %s574 = sand.u32 %s91, 1
        %s575 = smul.addr %s574, 128
        %s576 = scalar_lea.vmem [#allocation4], %s575
        // Predicated region
        $region167: #{rawsr_degradation_pipeline_v2.1} parent=161 // pred_check
          %p577 = pneg %p104
        $region168: #{rawsr_degradation_pipeline_v2.1} parent=161 // pred_check_branch
          %579 = sbr.rel (%p577) target = $region170
        $region169: #{rawsr_degradation_pipeline_v2.1} parent=161 // pred_region
          _
        $region170: #{rawsr_degradation_pipeline_v2.1} parent=161 // pred_fallthru
          _
        %s580 = sand.u32 %s119, 1
        %s581 = sand.u32 %s119, 1
        %s582 = smul.addr %s581, 128
        %s583 = scalar_lea.vmem [#allocation5], %s582
        // Predicated region
        $region171: #{rawsr_degradation_pipeline_v2.1} parent=161 // pred_check
          %p584 = pneg %p132
        $region172: #{rawsr_degradation_pipeline_v2.1} parent=161 // pred_check_branch
          %586 = sbr.rel (%p584) target = $region174
        $region173: #{rawsr_degradation_pipeline_v2.1} parent=161 // pred_region
          _
        $region174: #{rawsr_degradation_pipeline_v2.1} parent=161 // pred_fallthru
          _
        %s587 = sand.u32 %s145, 1
        %s588 = sand.u32 %s145, 1
        %s589 = smul.addr %s588, 128
        %s590 = scalar_lea.vmem [#allocation6], %s589
        // Predicated region
        $region175: #{rawsr_degradation_pipeline_v2.1} parent=161 // pred_check
          %p591 = pneg %p158
        $region176: #{rawsr_degradation_pipeline_v2.1} parent=161 // pred_check_branch
          %593 = sbr.rel (%p591) target = $region178
        $region177: #{rawsr_degradation_pipeline_v2.1} parent=161 // pred_region
          _
        $region178: #{rawsr_degradation_pipeline_v2.1} parent=161 // pred_fallthru
          _
        %s594 = sand.u32 %s173, 1
        %s595 = sand.u32 %s173, 1
        %s596 = smul.addr %s595, 128
        %s597 = scalar_lea.vmem [#allocation7], %s596
        // Predicated region
        $region179: #{rawsr_degradation_pipeline_v2.1} parent=161 // pred_check
          %p598 = pneg %p186
        $region180: #{rawsr_degradation_pipeline_v2.1} parent=161 // pred_check_branch
          %600 = sbr.rel (%p598) target = $region182
        $region181: #{rawsr_degradation_pipeline_v2.1} parent=161 // pred_region
          _
        $region182: #{rawsr_degradation_pipeline_v2.1} parent=161 // pred_fallthru
          _
        %s601 = sand.u32 %s199, 1
        %s602 = sand.u32 %s199, 1
        %s603 = smul.addr %s602, 32
        %s604 = scalar_lea.vmem [#allocation8], %s603
        // Predicated region
        $region183: #{rawsr_degradation_pipeline_v2.1} parent=161 // pred_check
          %p605 = pneg %p212
        $region184: #{rawsr_degradation_pipeline_v2.1} parent=161 // pred_check_branch
          %607 = sbr.rel (%p605) target = $region186
        $region185: #{rawsr_degradation_pipeline_v2.1} parent=161 // pred_region
          _
        $region186: #{rawsr_degradation_pipeline_v2.1} parent=161 // pred_fallthru
          _
        %608 = sfence
        %p609 = pneg %p36
        %p610 = pneg %p33
        %p611 = pneg %p57
        %p612 = pneg %p54
        %p613 = pneg %p78
        %p614 = pneg %p75
        %s615 = sand.u32 %s91, 1
        %s616 = sand.u32 %s91, 1
        %s617 = smul.addr %s616, 128
        %s618 = scalar_lea.vmem [#allocation4], %s617
        %p619 = pneg %p104
        %p620 = pneg %p101
        %s621 = sand.u32 %s119, 1
        %s622 = sand.u32 %s119, 1
        %s623 = smul.addr %s622, 128
        %s624 = scalar_lea.vmem [#allocation5], %s623
        %p625 = pneg %p132
        %p626 = pneg %p129
        %s627 = sand.u32 %s145, 1
        %s628 = sand.u32 %s145, 1
        %s629 = smul.addr %s628, 128
        %s630 = scalar_lea.vmem [#allocation6], %s629
        %p631 = pneg %p158
        %p632 = pneg %p155
        %s633 = sand.u32 %s173, 1
        %s634 = sand.u32 %s173, 1
        %s635 = smul.addr %s634, 128
        %s636 = scalar_lea.vmem [#allocation7], %s635
        %p637 = pneg %p186
        %p638 = pneg %p183
        %s639 = sand.u32 %s199, 1
        %s640 = sand.u32 %s199, 1
        %s641 = smul.addr %s640, 32
        %s642 = scalar_lea.vmem [#allocation8], %s641
        %p643 = pneg %p212
        %p644 = pneg %p209
        %p645 = pneg %p238
        %p646 = pneg %p235
        %s647 = sand.u32 %s225, 1
        %s648 = sand.u32 %s225, 1
        %s649 = smul.addr %s648, 32
        %s650 = scalar_lea.vmem [#allocation9], %s649
        %s651 = smul.u32 2, %s20
        %s652 = sadd.s32 %s20, 1
        %s653 = smul.u32 2, %s652
        %s654 = smul.u32 2, %s20
        %s655 = sadd.s32 %s20, 1
        %s656 = smul.u32 2, %s655
        %s657 = sld [smem:[#allocation2]]
        %s658 = sld [smem:[#allocation2 + $0x1]]
        %v659 = vld [vmem:[%s1] sm:$0xff]
        %v660 = vld [vmem:[%s1 + $0x8] sm:$0xff]
        %v661 = vld [vmem:[%s1 + $0x10] sm:$0xff]
        %v662 = vld [vmem:[%s2] sm:$0xff]
        %v663 = vld [vmem:[%s2 + $0x8] sm:$0xff]
        %v664 = vld [vmem:[%s2 + $0x10] sm:$0xff]
        %v665 = vld [vmem:[%s576] sm:$0xff]
        %v666 = vld [vmem:[%s576 + $0x8] sm:$0xff]
        %v667 = vld [vmem:[%s576 + $0x10] sm:$0xff]
        %v668 = vld [vmem:[%s576 + $0x18] sm:$0xff]
        %v669 = vld [vmem:[%s583] sm:$0xff]
        %v670 = vld [vmem:[%s583 + $0x8] sm:$0xff]
        %v671 = vld [vmem:[%s583 + $0x10] sm:$0xff]
        %v672 = vld [vmem:[%s583 + $0x18] sm:$0xff]
        %676 = vrot.lane.b32.xlu0 %v659, 112
        %v677 = vpop.permute.xlu0 %676
        %678 = vrot.lane.b32.xlu0 %v660, 112
        %v679 = vpop.permute.xlu0 %678
        %680 = vrot.lane.b32.xlu0 %v661, 112
        %v681 = vpop.permute.xlu0 %680
        %vm682 = vcmask 130048
        %v683 = vsel %vm682, %v677, 0
        %v685 = vsel %vm682, %v679, 0
        %v687 = vsel %vm682, %v681, 0
        %689 = vmatpush.msra.mxu0 0.0
        %690 = vmatpush.msra.mxu0 0.0
        %691 = vmatpush.msra.mxu0 0.0
        %692 = vmatpush.msra.mxu0 0.0
        %693 = vmatpush.msra.mxu0 0.0
        %694 = vmatpush.msra.mxu0 0.0
        %695 = vmatpush.msra.mxu0 0.0
        %696 = vmatpush.msra.mxu0 0.0
        %697 = vmatpush.msra.mxu0 0.0
        %698 = vmatpush.msra.mxu0 0.0
        %699 = vmatpush.msra.mxu0 0.0
        %700 = vmatpush.msra.mxu0 0.0
        %701 = vmatpush.msra.mxu0 0.0
        %702 = vmatpush.msra.mxu0 0.0
        %703 = vmatpush.msra.mxu0 %v671
        %704 = vmatpush.msra.mxu0 %v669
        %705 = vmatmul.f32.gmra.mxu0 %v683
        %v706 = vpop.f32.mrf.mxu0
        %v707 = vadd.f32 0.0, %v706
        %708 = vmatmul.f32.gmra.mxu0 %v685
        %v709 = vpop.f32.mrf.mxu0
        %v710 = vadd.f32 0.0, %v709
        %711 = vmatmul.f32.gmra.mxu0 %v687
        %v712 = vpop.f32.mrf.mxu0
        %v713 = vadd.f32 0.0, %v712
        %714 = vdwg.mxu0
        %715 = vmatpush.msra.mxu0 0.0
        %716 = vmatpush.msra.mxu0 0.0
        %717 = vmatpush.msra.mxu0 0.0
        %718 = vmatpush.msra.mxu0 0.0
        %719 = vmatpush.msra.mxu0 0.0
        %720 = vmatpush.msra.mxu0 0.0
        %721 = vmatpush.msra.mxu0 0.0
        %722 = vmatpush.msra.mxu0 0.0
        %723 = vmatpush.msra.mxu0 0.0
        %724 = vmatpush.msra.mxu0 0.0
        %725 = vmatpush.msra.mxu0 0.0
        %726 = vmatpush.msra.mxu0 0.0
        %727 = vmatpush.msra.mxu0 0.0
        %728 = vmatpush.msra.mxu0 0.0
        %729 = vmatpush.msra.mxu0 %v672
        %730 = vmatpush.msra.mxu0 %v670
        %731 = vmatmul.f32.gmra.mxu0 %v683
        %v732 = vpop.f32.mrf.mxu0
        %733 = vmatmul.f32.gmra.mxu0 %v685
        %v734 = vpop.f32.mrf.mxu0
        %v735 = vadd.f32 0.0, %v734
        %736 = vmatmul.f32.gmra.mxu0 %v687
        %v737 = vpop.f32.mrf.mxu0
        %v738 = vadd.f32 0.0, %v737
        %739 = vdwg.mxu0
        %v740 = vsel %vm682, %v659, 0
        %v742 = vsel %vm682, %v660, 0
        %v744 = vsel %vm682, %v661, 0
        %746 = vmatpush.msra.mxu0 0.0
        %747 = vmatpush.msra.mxu0 0.0
        %748 = vmatpush.msra.mxu0 0.0
        %749 = vmatpush.msra.mxu0 0.0
        %750 = vmatpush.msra.mxu0 0.0
        %751 = vmatpush.msra.mxu0 0.0
        %752 = vmatpush.msra.mxu0 0.0
        %753 = vmatpush.msra.mxu0 0.0
        %754 = vmatpush.msra.mxu0 0.0
        %755 = vmatpush.msra.mxu0 0.0
        %756 = vmatpush.msra.mxu0 0.0
        %757 = vmatpush.msra.mxu0 0.0
        %758 = vmatpush.msra.mxu0 0.0
        %759 = vmatpush.msra.mxu0 0.0
        %760 = vmatpush.msra.mxu0 %v667
        %761 = vmatpush.msra.mxu0 %v665
        %762 = vmatmul.f32.gmra.mxu0 %v740
        %v763 = vpop.f32.mrf.mxu0
        %v764 = vadd.f32 %v707, %v763
        %765 = vmatmul.f32.gmra.mxu0 %v742
        %v766 = vpop.f32.mrf.mxu0
        %v767 = vadd.f32 %v710, %v766
        %768 = vmatmul.f32.gmra.mxu0 %v744
        %v769 = vpop.f32.mrf.mxu0
        %v770 = vadd.f32 %v713, %v769
        %771 = vdwg.mxu0
        %772 = vmatpush.msra.mxu0 0.0
        %773 = vmatpush.msra.mxu0 0.0
        %774 = vmatpush.msra.mxu0 0.0
        %775 = vmatpush.msra.mxu0 0.0
        %776 = vmatpush.msra.mxu0 0.0
        %777 = vmatpush.msra.mxu0 0.0
        %778 = vmatpush.msra.mxu0 0.0
        %779 = vmatpush.msra.mxu0 0.0
        %780 = vmatpush.msra.mxu0 0.0
        %781 = vmatpush.msra.mxu0 0.0
        %782 = vmatpush.msra.mxu0 0.0
        %783 = vmatpush.msra.mxu0 0.0
        %784 = vmatpush.msra.mxu0 0.0
        %785 = vmatpush.msra.mxu0 0.0
        %786 = vmatpush.msra.mxu0 %v668
        %787 = vmatpush.msra.mxu0 %v666
        %788 = vmatmul.f32.gmra.mxu0 %v740
        %v789 = vpop.f32.mrf.mxu0
        %790 = vmatmul.f32.gmra.mxu0 %v742
        %v791 = vpop.f32.mrf.mxu0
        %v792 = vadd.f32 %v735, %v791
        %793 = vmatmul.f32.gmra.mxu0 %v744
        %v794 = vpop.f32.mrf.mxu0
        %v795 = vadd.f32 %v738, %v794
        %796 = vdwg.mxu0
        %v797 = vld [vmem:[%s590] sm:$0xff]
        %v798 = vld [vmem:[%s590 + $0x8] sm:$0xff]
        %v799 = vld [vmem:[%s590 + $0x10] sm:$0xff]
        %v800 = vld [vmem:[%s590 + $0x18] sm:$0xff]
        %v801 = vld [vmem:[%s597] sm:$0xff]
        %v802 = vld [vmem:[%s597 + $0x8] sm:$0xff]
        %v803 = vld [vmem:[%s597 + $0x10] sm:$0xff]
        %v804 = vld [vmem:[%s597 + $0x18] sm:$0xff]
        %808 = vrot.lane.b32.xlu0 %v662, 112
        %v809 = vpop.permute.xlu0 %808
        %810 = vrot.lane.b32.xlu0 %v663, 112
        %v811 = vpop.permute.xlu0 %810
        %812 = vrot.lane.b32.xlu0 %v664, 112
        %v813 = vpop.permute.xlu0 %812
        %v814 = vsel %vm682, %v809, 0
        %v816 = vsel %vm682, %v811, 0
        %v818 = vsel %vm682, %v813, 0
        %820 = vmatpush.msra.mxu0 0.0
        %821 = vmatpush.msra.mxu0 0.0
        %822 = vmatpush.msra.mxu0 0.0
        %823 = vmatpush.msra.mxu0 0.0
        %824 = vmatpush.msra.mxu0 0.0
        %825 = vmatpush.msra.mxu0 0.0
        %826 = vmatpush.msra.mxu0 0.0
        %827 = vmatpush.msra.mxu0 0.0
        %828 = vmatpush.msra.mxu0 0.0
        %829 = vmatpush.msra.mxu0 0.0
        %830 = vmatpush.msra.mxu0 0.0
        %831 = vmatpush.msra.mxu0 0.0
        %832 = vmatpush.msra.mxu0 0.0
        %833 = vmatpush.msra.mxu0 0.0
        %834 = vmatpush.msra.mxu0 %v803
        %835 = vmatpush.msra.mxu0 %v801
        %836 = vmatmul.f32.gmra.mxu0 %v814
        %v837 = vpop.f32.mrf.mxu0
        %v838 = vadd.f32 0.0, %v837
        %839 = vmatmul.f32.gmra.mxu0 %v816
        %v840 = vpop.f32.mrf.mxu0
        %v841 = vadd.f32 0.0, %v840
        %842 = vmatmul.f32.gmra.mxu0 %v818
        %v843 = vpop.f32.mrf.mxu0
        %v844 = vadd.f32 0.0, %v843
        %845 = vdwg.mxu0
        %846 = vmatpush.msra.mxu0 0.0
        %847 = vmatpush.msra.mxu0 0.0
        %848 = vmatpush.msra.mxu0 0.0
        %849 = vmatpush.msra.mxu0 0.0
        %850 = vmatpush.msra.mxu0 0.0
        %851 = vmatpush.msra.mxu0 0.0
        %852 = vmatpush.msra.mxu0 0.0
        %853 = vmatpush.msra.mxu0 0.0
        %854 = vmatpush.msra.mxu0 0.0
        %855 = vmatpush.msra.mxu0 0.0
        %856 = vmatpush.msra.mxu0 0.0
        %857 = vmatpush.msra.mxu0 0.0
        %858 = vmatpush.msra.mxu0 0.0
        %859 = vmatpush.msra.mxu0 0.0
        %860 = vmatpush.msra.mxu0 %v804
        %861 = vmatpush.msra.mxu0 %v802
        %862 = vmatmul.f32.gmra.mxu0 %v814
        %v863 = vpop.f32.mrf.mxu0
        %864 = vmatmul.f32.gmra.mxu0 %v816
        %v865 = vpop.f32.mrf.mxu0
        %v866 = vadd.f32 0.0, %v865
        %867 = vmatmul.f32.gmra.mxu0 %v818
        %v868 = vpop.f32.mrf.mxu0
        %v869 = vadd.f32 0.0, %v868
        %870 = vdwg.mxu0
        %v871 = vsel %vm682, %v662, 0
        %v873 = vsel %vm682, %v663, 0
        %v875 = vsel %vm682, %v664, 0
        %877 = vmatpush.msra.mxu0 0.0
        %878 = vmatpush.msra.mxu0 0.0
        %879 = vmatpush.msra.mxu0 0.0
        %880 = vmatpush.msra.mxu0 0.0
        %881 = vmatpush.msra.mxu0 0.0
        %882 = vmatpush.msra.mxu0 0.0
        %883 = vmatpush.msra.mxu0 0.0
        %884 = vmatpush.msra.mxu0 0.0
        %885 = vmatpush.msra.mxu0 0.0
        %886 = vmatpush.msra.mxu0 0.0
        %887 = vmatpush.msra.mxu0 0.0
        %888 = vmatpush.msra.mxu0 0.0
        %889 = vmatpush.msra.mxu0 0.0
        %890 = vmatpush.msra.mxu0 0.0
        %891 = vmatpush.msra.mxu0 %v799
        %892 = vmatpush.msra.mxu0 %v797
        %893 = vmatmul.f32.gmra.mxu0 %v871
        %v894 = vpop.f32.mrf.mxu0
        %v895 = vadd.f32 %v838, %v894
        %896 = vmatmul.f32.gmra.mxu0 %v873
        %v897 = vpop.f32.mrf.mxu0
        %v898 = vadd.f32 %v841, %v897
        %899 = vmatmul.f32.gmra.mxu0 %v875
        %v900 = vpop.f32.mrf.mxu0
        %v901 = vadd.f32 %v844, %v900
        %902 = vdwg.mxu0
        %903 = vmatpush.msra.mxu0 0.0
        %904 = vmatpush.msra.mxu0 0.0
        %905 = vmatpush.msra.mxu0 0.0
        %906 = vmatpush.msra.mxu0 0.0
        %907 = vmatpush.msra.mxu0 0.0
        %908 = vmatpush.msra.mxu0 0.0
        %909 = vmatpush.msra.mxu0 0.0
        %910 = vmatpush.msra.mxu0 0.0
        %911 = vmatpush.msra.mxu0 0.0
        %912 = vmatpush.msra.mxu0 0.0
        %913 = vmatpush.msra.mxu0 0.0
        %914 = vmatpush.msra.mxu0 0.0
        %915 = vmatpush.msra.mxu0 0.0
        %916 = vmatpush.msra.mxu0 0.0
        %917 = vmatpush.msra.mxu0 %v800
        %918 = vmatpush.msra.mxu0 %v798
        %919 = vmatmul.f32.gmra.mxu0 %v871
        %v920 = vpop.f32.mrf.mxu0
        %921 = vmatmul.f32.gmra.mxu0 %v873
        %v922 = vpop.f32.mrf.mxu0
        %v923 = vadd.f32 %v866, %v922
        %924 = vmatmul.f32.gmra.mxu0 %v875
        %v925 = vpop.f32.mrf.mxu0
        %v926 = vadd.f32 %v869, %v925
        %927 = vdwg.mxu0
        %v928 = vadd.f32 %v764, %v895
        %931 = vrot.lane.b32.xlu0 %v767, 127
        %v932 = vpop.permute.xlu0 %931
        %933 = vrot.lane.b32.xlu0 %v792, 127
        %v934 = vpop.permute.xlu0 %933
        %vm935 = vcmask 1039360
        %v936 = vsel %vm935, %v932, %v934
        %v938 = vadd.f32 %v928, %v936
        %941 = vrot.lane.b32.xlu0 %v898, 127
        %v942 = vpop.permute.xlu0 %941
        %943 = vrot.lane.b32.xlu0 %v923, 127
        %v944 = vpop.permute.xlu0 %943
        %v945 = vsel %vm935, %v942, %v944
        %v947 = vadd.f32 %v938, %v945
        %950 = vrot.lane.b32.xlu0 %v770, 126
        %v951 = vpop.permute.xlu0 %950
        %952 = vrot.lane.b32.xlu0 %v795, 126
        %v953 = vpop.permute.xlu0 %952
        %vm954 = vcmask 1031168
        %v955 = vsel %vm954, %v951, %v953
        %v957 = vadd.f32 %v947, %v955
        %960 = vrot.lane.b32.xlu0 %v901, 126
        %v961 = vpop.permute.xlu0 %960
        %962 = vrot.lane.b32.xlu0 %v926, 126
        %v963 = vpop.permute.xlu0 %962
        %v964 = vsel %vm954, %v961, %v963
        %v966 = vadd.f32 %v957, %v964
        %v967 = vmax.f32 %v966, 0.0
        %v968 = vstv %s657
        %v969 = vmul.f32 %v967, %v968
        %v970 = vstv %s658
        %v971 = vadd.f32 %v969, %v970
        %v972 = vmax.f32 %v971, 1e-12
        %v973 = vrsqrt.pop %v972
        %v974 = vmul.f32 %v973, %v972
        %v975 = vmul.f32 %v974, %v973
        %v976 = vmul.f32 0.5, %v975
        %v977 = vsub.f32 1.5, %v976
        %v978 = vmul.f32 %v973, %v977
        %v979 = vmul.f32 %v972, %v978
        %vm980 = vcmp.eq.f32.partialorder %v972, inf
        %v981 = vsel %vm980, %v972, %v979
        %vm982 = vcmp.eq.f32.partialorder %v972, 0.0
        %v983 = vand.u32 %v972, 2147483648
        %v984 = vsel %vm982, %v983, %v981
        %v985 = vld [vmem:[%s604] sm:$0xff]
        %v986 = vmul.f32 %v984, %v985
        %v987 = vadd.f32 %v966, %v986
        %v988 = vmax.f32 %v987, 0.0
        %v989 = vmin.f32 %v988, 1.0
        %990 = vst [vmem:[%s650] sm:$0xff] %v989
        %s991 = scalar_lea.vmem %s576, 32 [#allocation4]
        %v992 = vld [vmem:[%s991] sm:$0xff]
        %v993 = vld [vmem:[%s991 + $0x8] sm:$0xff]
        %v994 = vld [vmem:[%s991 + $0x10] sm:$0xff]
        %v995 = vld [vmem:[%s991 + $0x18] sm:$0xff]
        %s996 = scalar_lea.vmem %s583, 32 [#allocation5]
        %v997 = vld [vmem:[%s996] sm:$0xff]
        %v998 = vld [vmem:[%s996 + $0x8] sm:$0xff]
        %v999 = vld [vmem:[%s996 + $0x10] sm:$0xff]
        %v1000 = vld [vmem:[%s996 + $0x18] sm:$0xff]
        %1001 = vmatpush.msra.mxu0 0.0
        %1002 = vmatpush.msra.mxu0 0.0
        %1003 = vmatpush.msra.mxu0 0.0
        %1004 = vmatpush.msra.mxu0 0.0
        %1005 = vmatpush.msra.mxu0 0.0
        %1006 = vmatpush.msra.mxu0 0.0
        %1007 = vmatpush.msra.mxu0 0.0
        %1008 = vmatpush.msra.mxu0 0.0
        %1009 = vmatpush.msra.mxu0 0.0
        %1010 = vmatpush.msra.mxu0 0.0
        %1011 = vmatpush.msra.mxu0 0.0
        %1012 = vmatpush.msra.mxu0 0.0
        %1013 = vmatpush.msra.mxu0 0.0
        %1014 = vmatpush.msra.mxu0 0.0
        %1015 = vmatpush.msra.mxu0 %v999
        %1016 = vmatpush.msra.mxu0 %v997
        %1017 = vmatmul.f32.gmra.mxu0 %v683
        %v1018 = vpop.f32.mrf.mxu0
        %v1019 = vadd.f32 0.0, %v1018
        %1020 = vmatmul.f32.gmra.mxu0 %v685
        %v1021 = vpop.f32.mrf.mxu0
        %v1022 = vadd.f32 0.0, %v1021
        %1023 = vmatmul.f32.gmra.mxu0 %v687
        %v1024 = vpop.f32.mrf.mxu0
        %v1025 = vadd.f32 0.0, %v1024
        %1026 = vdwg.mxu0
        %1027 = vmatpush.msra.mxu0 0.0
        %1028 = vmatpush.msra.mxu0 0.0
        %1029 = vmatpush.msra.mxu0 0.0
        %1030 = vmatpush.msra.mxu0 0.0
        %1031 = vmatpush.msra.mxu0 0.0
        %1032 = vmatpush.msra.mxu0 0.0
        %1033 = vmatpush.msra.mxu0 0.0
        %1034 = vmatpush.msra.mxu0 0.0
        %1035 = vmatpush.msra.mxu0 0.0
        %1036 = vmatpush.msra.mxu0 0.0
        %1037 = vmatpush.msra.mxu0 0.0
        %1038 = vmatpush.msra.mxu0 0.0
        %1039 = vmatpush.msra.mxu0 0.0
        %1040 = vmatpush.msra.mxu0 0.0
        %1041 = vmatpush.msra.mxu0 %v1000
        %1042 = vmatpush.msra.mxu0 %v998
        %1043 = vmatmul.f32.gmra.mxu0 %v683
        %v1044 = vpop.f32.mrf.mxu0
        %1045 = vmatmul.f32.gmra.mxu0 %v685
        %v1046 = vpop.f32.mrf.mxu0
        %v1047 = vadd.f32 0.0, %v1046
        %1048 = vmatmul.f32.gmra.mxu0 %v687
        %v1049 = vpop.f32.mrf.mxu0
        %v1050 = vadd.f32 0.0, %v1049
        %1051 = vdwg.mxu0
        %1052 = vmatpush.msra.mxu0 0.0
        %1053 = vmatpush.msra.mxu0 0.0
        %1054 = vmatpush.msra.mxu0 0.0
        %1055 = vmatpush.msra.mxu0 0.0
        %1056 = vmatpush.msra.mxu0 0.0
        %1057 = vmatpush.msra.mxu0 0.0
        %1058 = vmatpush.msra.mxu0 0.0
        %1059 = vmatpush.msra.mxu0 0.0
        %1060 = vmatpush.msra.mxu0 0.0
        %1061 = vmatpush.msra.mxu0 0.0
        %1062 = vmatpush.msra.mxu0 0.0
        %1063 = vmatpush.msra.mxu0 0.0
        %1064 = vmatpush.msra.mxu0 0.0
        %1065 = vmatpush.msra.mxu0 0.0
        %1066 = vmatpush.msra.mxu0 %v994
        %1067 = vmatpush.msra.mxu0 %v992
        %1068 = vmatmul.f32.gmra.mxu0 %v740
        %v1069 = vpop.f32.mrf.mxu0
        %v1070 = vadd.f32 %v1019, %v1069
        %1071 = vmatmul.f32.gmra.mxu0 %v742
        %v1072 = vpop.f32.mrf.mxu0
        %v1073 = vadd.f32 %v1022, %v1072
        %1074 = vmatmul.f32.gmra.mxu0 %v744
        %v1075 = vpop.f32.mrf.mxu0
        %v1076 = vadd.f32 %v1025, %v1075
        %1077 = vdwg.mxu0
        %1078 = vmatpush.msra.mxu0 0.0
        %1079 = vmatpush.msra.mxu0 0.0
        %1080 = vmatpush.msra.mxu0 0.0
        %1081 = vmatpush.msra.mxu0 0.0
        %1082 = vmatpush.msra.mxu0 0.0
        %1083 = vmatpush.msra.mxu0 0.0
        %1084 = vmatpush.msra.mxu0 0.0
        %1085 = vmatpush.msra.mxu0 0.0
        %1086 = vmatpush.msra.mxu0 0.0
        %1087 = vmatpush.msra.mxu0 0.0
        %1088 = vmatpush.msra.mxu0 0.0
        %1089 = vmatpush.msra.mxu0 0.0
        %1090 = vmatpush.msra.mxu0 0.0
        %1091 = vmatpush.msra.mxu0 0.0
        %1092 = vmatpush.msra.mxu0 %v995
        %1093 = vmatpush.msra.mxu0 %v993
        %1094 = vmatmul.f32.gmra.mxu0 %v740
        %v1095 = vpop.f32.mrf.mxu0
        %1096 = vmatmul.f32.gmra.mxu0 %v742
        %v1097 = vpop.f32.mrf.mxu0
        %v1098 = vadd.f32 %v1047, %v1097
        %1099 = vmatmul.f32.gmra.mxu0 %v744
        %v1100 = vpop.f32.mrf.mxu0
        %v1101 = vadd.f32 %v1050, %v1100
        %1102 = vdwg.mxu0
        %s1103 = scalar_lea.vmem %s590, 32 [#allocation6]
        %v1104 = vld [vmem:[%s1103] sm:$0xff]
        %v1105 = vld [vmem:[%s1103 + $0x8] sm:$0xff]
        %v1106 = vld [vmem:[%s1103 + $0x10] sm:$0xff]
        %v1107 = vld [vmem:[%s1103 + $0x18] sm:$0xff]
        %s1108 = scalar_lea.vmem %s597, 32 [#allocation7]
        %v1109 = vld [vmem:[%s1108] sm:$0xff]
        %v1110 = vld [vmem:[%s1108 + $0x8] sm:$0xff]
        %v1111 = vld [vmem:[%s1108 + $0x10] sm:$0xff]
        %v1112 = vld [vmem:[%s1108 + $0x18] sm:$0xff]
        %1113 = vmatpush.msra.mxu0 0.0
        %1114 = vmatpush.msra.mxu0 0.0
        %1115 = vmatpush.msra.mxu0 0.0
        %1116 = vmatpush.msra.mxu0 0.0
        %1117 = vmatpush.msra.mxu0 0.0
        %1118 = vmatpush.msra.mxu0 0.0
        %1119 = vmatpush.msra.mxu0 0.0
        %1120 = vmatpush.msra.mxu0 0.0
        %1121 = vmatpush.msra.mxu0 0.0
        %1122 = vmatpush.msra.mxu0 0.0
        %1123 = vmatpush.msra.mxu0 0.0
        %1124 = vmatpush.msra.mxu0 0.0
        %1125 = vmatpush.msra.mxu0 0.0
        %1126 = vmatpush.msra.mxu0 0.0
        %1127 = vmatpush.msra.mxu0 %v1111
        %1128 = vmatpush.msra.mxu0 %v1109
        %1129 = vmatmul.f32.gmra.mxu0 %v814
        %v1130 = vpop.f32.mrf.mxu0
        %v1131 = vadd.f32 0.0, %v1130
        %1132 = vmatmul.f32.gmra.mxu0 %v816
        %v1133 = vpop.f32.mrf.mxu0
        %v1134 = vadd.f32 0.0, %v1133
        %1135 = vmatmul.f32.gmra.mxu0 %v818
        %v1136 = vpop.f32.mrf.mxu0
        %v1137 = vadd.f32 0.0, %v1136
        %1138 = vdwg.mxu0
        %1139 = vmatpush.msra.mxu0 0.0
        %1140 = vmatpush.msra.mxu0 0.0
        %1141 = vmatpush.msra.mxu0 0.0
        %1142 = vmatpush.msra.mxu0 0.0
        %1143 = vmatpush.msra.mxu0 0.0
        %1144 = vmatpush.msra.mxu0 0.0
        %1145 = vmatpush.msra.mxu0 0.0
        %1146 = vmatpush.msra.mxu0 0.0
        %1147 = vmatpush.msra.mxu0 0.0
        %1148 = vmatpush.msra.mxu0 0.0
        %1149 = vmatpush.msra.mxu0 0.0
        %1150 = vmatpush.msra.mxu0 0.0
        %1151 = vmatpush.msra.mxu0 0.0
        %1152 = vmatpush.msra.mxu0 0.0
        %1153 = vmatpush.msra.mxu0 %v1112
        %1154 = vmatpush.msra.mxu0 %v1110
        %1155 = vmatmul.f32.gmra.mxu0 %v814
        %v1156 = vpop.f32.mrf.mxu0
        %1157 = vmatmul.f32.gmra.mxu0 %v816
        %v1158 = vpop.f32.mrf.mxu0
        %v1159 = vadd.f32 0.0, %v1158
        %1160 = vmatmul.f32.gmra.mxu0 %v818
        %v1161 = vpop.f32.mrf.mxu0
        %v1162 = vadd.f32 0.0, %v1161
        %1163 = vdwg.mxu0
        %1164 = vmatpush.msra.mxu0 0.0
        %1165 = vmatpush.msra.mxu0 0.0
        %1166 = vmatpush.msra.mxu0 0.0
        %1167 = vmatpush.msra.mxu0 0.0
        %1168 = vmatpush.msra.mxu0 0.0
        %1169 = vmatpush.msra.mxu0 0.0
        %1170 = vmatpush.msra.mxu0 0.0
        %1171 = vmatpush.msra.mxu0 0.0
        %1172 = vmatpush.msra.mxu0 0.0
        %1173 = vmatpush.msra.mxu0 0.0
        %1174 = vmatpush.msra.mxu0 0.0
        %1175 = vmatpush.msra.mxu0 0.0
        %1176 = vmatpush.msra.mxu0 0.0
        %1177 = vmatpush.msra.mxu0 0.0
        %1178 = vmatpush.msra.mxu0 %v1106
        %1179 = vmatpush.msra.mxu0 %v1104
        %1180 = vmatmul.f32.gmra.mxu0 %v871
        %v1181 = vpop.f32.mrf.mxu0
        %v1182 = vadd.f32 %v1131, %v1181
        %1183 = vmatmul.f32.gmra.mxu0 %v873
        %v1184 = vpop.f32.mrf.mxu0
        %v1185 = vadd.f32 %v1134, %v1184
        %1186 = vmatmul.f32.gmra.mxu0 %v875
        %v1187 = vpop.f32.mrf.mxu0
        %v1188 = vadd.f32 %v1137, %v1187
        %1189 = vdwg.mxu0
        %1190 = vmatpush.msra.mxu0 0.0
        %1191 = vmatpush.msra.mxu0 0.0
        %1192 = vmatpush.msra.mxu0 0.0
        %1193 = vmatpush.msra.mxu0 0.0
        %1194 = vmatpush.msra.mxu0 0.0
        %1195 = vmatpush.msra.mxu0 0.0
        %1196 = vmatpush.msra.mxu0 0.0
        %1197 = vmatpush.msra.mxu0 0.0
        %1198 = vmatpush.msra.mxu0 0.0
        %1199 = vmatpush.msra.mxu0 0.0
        %1200 = vmatpush.msra.mxu0 0.0
        %1201 = vmatpush.msra.mxu0 0.0
        %1202 = vmatpush.msra.mxu0 0.0
        %1203 = vmatpush.msra.mxu0 0.0
        %1204 = vmatpush.msra.mxu0 %v1107
        %1205 = vmatpush.msra.mxu0 %v1105
        %1206 = vmatmul.f32.gmra.mxu0 %v871
        %v1207 = vpop.f32.mrf.mxu0
        %1208 = vmatmul.f32.gmra.mxu0 %v873
        %v1209 = vpop.f32.mrf.mxu0
        %v1210 = vadd.f32 %v1159, %v1209
        %1211 = vmatmul.f32.gmra.mxu0 %v875
        %v1212 = vpop.f32.mrf.mxu0
        %v1213 = vadd.f32 %v1162, %v1212
        %1214 = vdwg.mxu0
        %v1215 = vadd.f32 %v1070, %v1182
        %1218 = vrot.lane.b32.xlu0 %v1073, 127
        %v1219 = vpop.permute.xlu0 %1218
        %1220 = vrot.lane.b32.xlu0 %v1098, 127
        %v1221 = vpop.permute.xlu0 %1220
        %v1222 = vsel %vm935, %v1219, %v1221
        %v1224 = vadd.f32 %v1215, %v1222
        %1227 = vrot.lane.b32.xlu0 %v1185, 127
        %v1228 = vpop.permute.xlu0 %1227
        %1229 = vrot.lane.b32.xlu0 %v1210, 127
        %v1230 = vpop.permute.xlu0 %1229
        %v1231 = vsel %vm935, %v1228, %v1230
        %v1233 = vadd.f32 %v1224, %v1231
        %1236 = vrot.lane.b32.xlu0 %v1076, 126
        %v1237 = vpop.permute.xlu0 %1236
        %1238 = vrot.lane.b32.xlu0 %v1101, 126
        %v1239 = vpop.permute.xlu0 %1238
        %v1240 = vsel %vm954, %v1237, %v1239
        %v1242 = vadd.f32 %v1233, %v1240
        %1245 = vrot.lane.b32.xlu0 %v1188, 126
        %v1246 = vpop.permute.xlu0 %1245
        %1247 = vrot.lane.b32.xlu0 %v1213, 126
        %v1248 = vpop.permute.xlu0 %1247
        %v1249 = vsel %vm954, %v1246, %v1248
        %v1251 = vadd.f32 %v1242, %v1249
        %v1252 = vmax.f32 %v1251, 0.0
        %v1253 = vmul.f32 %v1252, %v968
        %v1254 = vadd.f32 %v1253, %v970
        %v1255 = vmax.f32 %v1254, 1e-12
        %v1256 = vrsqrt.pop %v1255
        %v1257 = vmul.f32 %v1256, %v1255
        %v1258 = vmul.f32 %v1257, %v1256
        %v1259 = vmul.f32 0.5, %v1258
        %v1260 = vsub.f32 1.5, %v1259
        %v1261 = vmul.f32 %v1256, %v1260
        %v1262 = vmul.f32 %v1255, %v1261
        %vm1263 = vcmp.eq.f32.partialorder %v1255, inf
        %v1264 = vsel %vm1263, %v1255, %v1262
        %vm1265 = vcmp.eq.f32.partialorder %v1255, 0.0
        %v1266 = vand.u32 %v1255, 2147483648
        %v1267 = vsel %vm1265, %v1266, %v1264
        %s1268 = scalar_lea.vmem %s604, 8 [#allocation8]
        %v1269 = vld [vmem:[%s1268] sm:$0xff]
        %v1270 = vmul.f32 %v1267, %v1269
        %v1271 = vadd.f32 %v1251, %v1270
        %v1272 = vmax.f32 %v1271, 0.0
        %v1273 = vmin.f32 %v1272, 1.0
        %s1274 = scalar_lea.vmem %s650, 8 [#allocation9]
        %1275 = vst [vmem:[%s1274] sm:$0xff] %v1273
        %s1276 = scalar_lea.vmem %s576, 64 [#allocation4]
        %v1277 = vld [vmem:[%s1276] sm:$0xff]
        %v1278 = vld [vmem:[%s1276 + $0x8] sm:$0xff]
        %v1279 = vld [vmem:[%s1276 + $0x10] sm:$0xff]
        %v1280 = vld [vmem:[%s1276 + $0x18] sm:$0xff]
        %s1281 = scalar_lea.vmem %s583, 64 [#allocation5]
        %v1282 = vld [vmem:[%s1281] sm:$0xff]
        %v1283 = vld [vmem:[%s1281 + $0x8] sm:$0xff]
        %v1284 = vld [vmem:[%s1281 + $0x10] sm:$0xff]
        %v1285 = vld [vmem:[%s1281 + $0x18] sm:$0xff]
        %1286 = vmatpush.msra.mxu0 0.0
        %1287 = vmatpush.msra.mxu0 0.0
        %1288 = vmatpush.msra.mxu0 0.0
        %1289 = vmatpush.msra.mxu0 0.0
        %1290 = vmatpush.msra.mxu0 0.0
        %1291 = vmatpush.msra.mxu0 0.0
        %1292 = vmatpush.msra.mxu0 0.0
        %1293 = vmatpush.msra.mxu0 0.0
        %1294 = vmatpush.msra.mxu0 0.0
        %1295 = vmatpush.msra.mxu0 0.0
        %1296 = vmatpush.msra.mxu0 0.0
        %1297 = vmatpush.msra.mxu0 0.0
        %1298 = vmatpush.msra.mxu0 0.0
        %1299 = vmatpush.msra.mxu0 0.0
        %1300 = vmatpush.msra.mxu0 %v1284
        %1301 = vmatpush.msra.mxu0 %v1282
        %1302 = vmatmul.f32.gmra.mxu0 %v683
        %v1303 = vpop.f32.mrf.mxu0
        %v1304 = vadd.f32 0.0, %v1303
        %1305 = vmatmul.f32.gmra.mxu0 %v685
        %v1306 = vpop.f32.mrf.mxu0
        %v1307 = vadd.f32 0.0, %v1306
        %1308 = vmatmul.f32.gmra.mxu0 %v687
        %v1309 = vpop.f32.mrf.mxu0
        %v1310 = vadd.f32 0.0, %v1309
        %1311 = vdwg.mxu0
        %1312 = vmatpush.msra.mxu0 0.0
        %1313 = vmatpush.msra.mxu0 0.0
        %1314 = vmatpush.msra.mxu0 0.0
        %1315 = vmatpush.msra.mxu0 0.0
        %1316 = vmatpush.msra.mxu0 0.0
        %1317 = vmatpush.msra.mxu0 0.0
        %1318 = vmatpush.msra.mxu0 0.0
        %1319 = vmatpush.msra.mxu0 0.0
        %1320 = vmatpush.msra.mxu0 0.0
        %1321 = vmatpush.msra.mxu0 0.0
        %1322 = vmatpush.msra.mxu0 0.0
        %1323 = vmatpush.msra.mxu0 0.0
        %1324 = vmatpush.msra.mxu0 0.0
        %1325 = vmatpush.msra.mxu0 0.0
        %1326 = vmatpush.msra.mxu0 %v1285
        %1327 = vmatpush.msra.mxu0 %v1283
        %1328 = vmatmul.f32.gmra.mxu0 %v683
        %v1329 = vpop.f32.mrf.mxu0
        %1330 = vmatmul.f32.gmra.mxu0 %v685
        %v1331 = vpop.f32.mrf.mxu0
        %v1332 = vadd.f32 0.0, %v1331
        %1333 = vmatmul.f32.gmra.mxu0 %v687
        %v1334 = vpop.f32.mrf.mxu0
        %v1335 = vadd.f32 0.0, %v1334
        %1336 = vdwg.mxu0
        %1337 = vmatpush.msra.mxu0 0.0
        %1338 = vmatpush.msra.mxu0 0.0
        %1339 = vmatpush.msra.mxu0 0.0
        %1340 = vmatpush.msra.mxu0 0.0
        %1341 = vmatpush.msra.mxu0 0.0
        %1342 = vmatpush.msra.mxu0 0.0
        %1343 = vmatpush.msra.mxu0 0.0
        %1344 = vmatpush.msra.mxu0 0.0
        %1345 = vmatpush.msra.mxu0 0.0
        %1346 = vmatpush.msra.mxu0 0.0
        %1347 = vmatpush.msra.mxu0 0.0
        %1348 = vmatpush.msra.mxu0 0.0
        %1349 = vmatpush.msra.mxu0 0.0
        %1350 = vmatpush.msra.mxu0 0.0
        %1351 = vmatpush.msra.mxu0 %v1279
        %1352 = vmatpush.msra.mxu0 %v1277
        %1353 = vmatmul.f32.gmra.mxu0 %v740
        %v1354 = vpop.f32.mrf.mxu0
        %v1355 = vadd.f32 %v1304, %v1354
        %1356 = vmatmul.f32.gmra.mxu0 %v742
        %v1357 = vpop.f32.mrf.mxu0
        %v1358 = vadd.f32 %v1307, %v1357
        %1359 = vmatmul.f32.gmra.mxu0 %v744
        %v1360 = vpop.f32.mrf.mxu0
        %v1361 = vadd.f32 %v1310, %v1360
        %1362 = vdwg.mxu0
        %1363 = vmatpush.msra.mxu0 0.0
        %1364 = vmatpush.msra.mxu0 0.0
        %1365 = vmatpush.msra.mxu0 0.0
        %1366 = vmatpush.msra.mxu0 0.0
        %1367 = vmatpush.msra.mxu0 0.0
        %1368 = vmatpush.msra.mxu0 0.0
        %1369 = vmatpush.msra.mxu0 0.0
        %1370 = vmatpush.msra.mxu0 0.0
        %1371 = vmatpush.msra.mxu0 0.0
        %1372 = vmatpush.msra.mxu0 0.0
        %1373 = vmatpush.msra.mxu0 0.0
        %1374 = vmatpush.msra.mxu0 0.0
        %1375 = vmatpush.msra.mxu0 0.0
        %1376 = vmatpush.msra.mxu0 0.0
        %1377 = vmatpush.msra.mxu0 %v1280
        %1378 = vmatpush.msra.mxu0 %v1278
        %1379 = vmatmul.f32.gmra.mxu0 %v740
        %v1380 = vpop.f32.mrf.mxu0
        %1381 = vmatmul.f32.gmra.mxu0 %v742
        %v1382 = vpop.f32.mrf.mxu0
        %v1383 = vadd.f32 %v1332, %v1382
        %1384 = vmatmul.f32.gmra.mxu0 %v744
        %v1385 = vpop.f32.mrf.mxu0
        %v1386 = vadd.f32 %v1335, %v1385
        %1387 = vdwg.mxu0
        %s1388 = scalar_lea.vmem %s590, 64 [#allocation6]
        %v1389 = vld [vmem:[%s1388] sm:$0xff]
        %v1390 = vld [vmem:[%s1388 + $0x8] sm:$0xff]
        %v1391 = vld [vmem:[%s1388 + $0x10] sm:$0xff]
        %v1392 = vld [vmem:[%s1388 + $0x18] sm:$0xff]
        %s1393 = scalar_lea.vmem %s597, 64 [#allocation7]
        %v1394 = vld [vmem:[%s1393] sm:$0xff]
        %v1395 = vld [vmem:[%s1393 + $0x8] sm:$0xff]
        %v1396 = vld [vmem:[%s1393 + $0x10] sm:$0xff]
        %v1397 = vld [vmem:[%s1393 + $0x18] sm:$0xff]
        %1398 = vmatpush.msra.mxu0 0.0
        %1399 = vmatpush.msra.mxu0 0.0
        %1400 = vmatpush.msra.mxu0 0.0
        %1401 = vmatpush.msra.mxu0 0.0
        %1402 = vmatpush.msra.mxu0 0.0
        %1403 = vmatpush.msra.mxu0 0.0
        %1404 = vmatpush.msra.mxu0 0.0
        %1405 = vmatpush.msra.mxu0 0.0
        %1406 = vmatpush.msra.mxu0 0.0
        %1407 = vmatpush.msra.mxu0 0.0
        %1408 = vmatpush.msra.mxu0 0.0
        %1409 = vmatpush.msra.mxu0 0.0
        %1410 = vmatpush.msra.mxu0 0.0
        %1411 = vmatpush.msra.mxu0 0.0
        %1412 = vmatpush.msra.mxu0 %v1396
        %1413 = vmatpush.msra.mxu0 %v1394
        %1414 = vmatmul.f32.gmra.mxu0 %v814
        %v1415 = vpop.f32.mrf.mxu0
        %v1416 = vadd.f32 0.0, %v1415
        %1417 = vmatmul.f32.gmra.mxu0 %v816
        %v1418 = vpop.f32.mrf.mxu0
        %v1419 = vadd.f32 0.0, %v1418
        %1420 = vmatmul.f32.gmra.mxu0 %v818
        %v1421 = vpop.f32.mrf.mxu0
        %v1422 = vadd.f32 0.0, %v1421
        %1423 = vdwg.mxu0
        %1424 = vmatpush.msra.mxu0 0.0
        %1425 = vmatpush.msra.mxu0 0.0
        %1426 = vmatpush.msra.mxu0 0.0
        %1427 = vmatpush.msra.mxu0 0.0
        %1428 = vmatpush.msra.mxu0 0.0
        %1429 = vmatpush.msra.mxu0 0.0
        %1430 = vmatpush.msra.mxu0 0.0
        %1431 = vmatpush.msra.mxu0 0.0
        %1432 = vmatpush.msra.mxu0 0.0
        %1433 = vmatpush.msra.mxu0 0.0
        %1434 = vmatpush.msra.mxu0 0.0
        %1435 = vmatpush.msra.mxu0 0.0
        %1436 = vmatpush.msra.mxu0 0.0
        %1437 = vmatpush.msra.mxu0 0.0
        %1438 = vmatpush.msra.mxu0 %v1397
        %1439 = vmatpush.msra.mxu0 %v1395
        %1440 = vmatmul.f32.gmra.mxu0 %v814
        %v1441 = vpop.f32.mrf.mxu0
        %1442 = vmatmul.f32.gmra.mxu0 %v816
        %v1443 = vpop.f32.mrf.mxu0
        %v1444 = vadd.f32 0.0, %v1443
        %1445 = vmatmul.f32.gmra.mxu0 %v818
        %v1446 = vpop.f32.mrf.mxu0
        %v1447 = vadd.f32 0.0, %v1446
        %1448 = vdwg.mxu0
        %1449 = vmatpush.msra.mxu0 0.0
        %1450 = vmatpush.msra.mxu0 0.0
        %1451 = vmatpush.msra.mxu0 0.0
        %1452 = vmatpush.msra.mxu0 0.0
        %1453 = vmatpush.msra.mxu0 0.0
        %1454 = vmatpush.msra.mxu0 0.0
        %1455 = vmatpush.msra.mxu0 0.0
        %1456 = vmatpush.msra.mxu0 0.0
        %1457 = vmatpush.msra.mxu0 0.0
        %1458 = vmatpush.msra.mxu0 0.0
        %1459 = vmatpush.msra.mxu0 0.0
        %1460 = vmatpush.msra.mxu0 0.0
        %1461 = vmatpush.msra.mxu0 0.0
        %1462 = vmatpush.msra.mxu0 0.0
        %1463 = vmatpush.msra.mxu0 %v1391
        %1464 = vmatpush.msra.mxu0 %v1389
        %1465 = vmatmul.f32.gmra.mxu0 %v871
        %v1466 = vpop.f32.mrf.mxu0
        %v1467 = vadd.f32 %v1416, %v1466
        %1468 = vmatmul.f32.gmra.mxu0 %v873
        %v1469 = vpop.f32.mrf.mxu0
        %v1470 = vadd.f32 %v1419, %v1469
        %1471 = vmatmul.f32.gmra.mxu0 %v875
        %v1472 = vpop.f32.mrf.mxu0
        %v1473 = vadd.f32 %v1422, %v1472
        %1474 = vdwg.mxu0
        %1475 = vmatpush.msra.mxu0 0.0
        %1476 = vmatpush.msra.mxu0 0.0
        %1477 = vmatpush.msra.mxu0 0.0
        %1478 = vmatpush.msra.mxu0 0.0
        %1479 = vmatpush.msra.mxu0 0.0
        %1480 = vmatpush.msra.mxu0 0.0
        %1481 = vmatpush.msra.mxu0 0.0
        %1482 = vmatpush.msra.mxu0 0.0
        %1483 = vmatpush.msra.mxu0 0.0
        %1484 = vmatpush.msra.mxu0 0.0
        %1485 = vmatpush.msra.mxu0 0.0
        %1486 = vmatpush.msra.mxu0 0.0
        %1487 = vmatpush.msra.mxu0 0.0
        %1488 = vmatpush.msra.mxu0 0.0
        %1489 = vmatpush.msra.mxu0 %v1392
        %1490 = vmatpush.msra.mxu0 %v1390
        %1491 = vmatmul.f32.gmra.mxu0 %v871
        %v1492 = vpop.f32.mrf.mxu0
        %1493 = vmatmul.f32.gmra.mxu0 %v873
        %v1494 = vpop.f32.mrf.mxu0
        %v1495 = vadd.f32 %v1444, %v1494
        %1496 = vmatmul.f32.gmra.mxu0 %v875
        %v1497 = vpop.f32.mrf.mxu0
        %v1498 = vadd.f32 %v1447, %v1497
        %1499 = vdwg.mxu0
        %v1500 = vadd.f32 %v1355, %v1467
        %1503 = vrot.lane.b32.xlu0 %v1358, 127
        %v1504 = vpop.permute.xlu0 %1503
        %1505 = vrot.lane.b32.xlu0 %v1383, 127
        %v1506 = vpop.permute.xlu0 %1505
        %v1507 = vsel %vm935, %v1504, %v1506
        %v1509 = vadd.f32 %v1500, %v1507
        %1512 = vrot.lane.b32.xlu0 %v1470, 127
        %v1513 = vpop.permute.xlu0 %1512
        %1514 = vrot.lane.b32.xlu0 %v1495, 127
        %v1515 = vpop.permute.xlu0 %1514
        %v1516 = vsel %vm935, %v1513, %v1515
        %v1518 = vadd.f32 %v1509, %v1516
        %1521 = vrot.lane.b32.xlu0 %v1361, 126
        %v1522 = vpop.permute.xlu0 %1521
        %1523 = vrot.lane.b32.xlu0 %v1386, 126
        %v1524 = vpop.permute.xlu0 %1523
        %v1525 = vsel %vm954, %v1522, %v1524
        %v1527 = vadd.f32 %v1518, %v1525
        %1530 = vrot.lane.b32.xlu0 %v1473, 126
        %v1531 = vpop.permute.xlu0 %1530
        %1532 = vrot.lane.b32.xlu0 %v1498, 126
        %v1533 = vpop.permute.xlu0 %1532
        %v1534 = vsel %vm954, %v1531, %v1533
        %v1536 = vadd.f32 %v1527, %v1534
        %v1537 = vmax.f32 %v1536, 0.0
        %v1538 = vmul.f32 %v1537, %v968
        %v1539 = vadd.f32 %v1538, %v970
        %v1540 = vmax.f32 %v1539, 1e-12
        %v1541 = vrsqrt.pop %v1540
        %v1542 = vmul.f32 %v1541, %v1540
        %v1543 = vmul.f32 %v1542, %v1541
        %v1544 = vmul.f32 0.5, %v1543
        %v1545 = vsub.f32 1.5, %v1544
        %v1546 = vmul.f32 %v1541, %v1545
        %v1547 = vmul.f32 %v1540, %v1546
        %vm1548 = vcmp.eq.f32.partialorder %v1540, inf
        %v1549 = vsel %vm1548, %v1540, %v1547
        %vm1550 = vcmp.eq.f32.partialorder %v1540, 0.0
        %v1551 = vand.u32 %v1540, 2147483648
        %v1552 = vsel %vm1550, %v1551, %v1549
        %s1553 = scalar_lea.vmem %s604, 16 [#allocation8]
        %v1554 = vld [vmem:[%s1553] sm:$0xff]
        %v1555 = vmul.f32 %v1552, %v1554
        %v1556 = vadd.f32 %v1536, %v1555
        %v1557 = vmax.f32 %v1556, 0.0
        %v1558 = vmin.f32 %v1557, 1.0
        %s1559 = scalar_lea.vmem %s650, 16 [#allocation9]
        %1560 = vst [vmem:[%s1559] sm:$0xff] %v1558
        %s1561 = scalar_lea.vmem %s576, 96 [#allocation4]
        %v1562 = vld [vmem:[%s1561] sm:$0xff]
        %v1563 = vld [vmem:[%s1561 + $0x8] sm:$0xff]
        %v1564 = vld [vmem:[%s1561 + $0x10] sm:$0xff]
        %v1565 = vld [vmem:[%s1561 + $0x18] sm:$0xff]
        %s1566 = scalar_lea.vmem %s583, 96 [#allocation5]
        %v1567 = vld [vmem:[%s1566] sm:$0xff]
        %v1568 = vld [vmem:[%s1566 + $0x8] sm:$0xff]
        %v1569 = vld [vmem:[%s1566 + $0x10] sm:$0xff]
        %v1570 = vld [vmem:[%s1566 + $0x18] sm:$0xff]
        %1571 = vmatpush.msra.mxu0 0.0
        %1572 = vmatpush.msra.mxu0 0.0
        %1573 = vmatpush.msra.mxu0 0.0
        %1574 = vmatpush.msra.mxu0 0.0
        %1575 = vmatpush.msra.mxu0 0.0
        %1576 = vmatpush.msra.mxu0 0.0
        %1577 = vmatpush.msra.mxu0 0.0
        %1578 = vmatpush.msra.mxu0 0.0
        %1579 = vmatpush.msra.mxu0 0.0
        %1580 = vmatpush.msra.mxu0 0.0
        %1581 = vmatpush.msra.mxu0 0.0
        %1582 = vmatpush.msra.mxu0 0.0
        %1583 = vmatpush.msra.mxu0 0.0
        %1584 = vmatpush.msra.mxu0 0.0
        %1585 = vmatpush.msra.mxu0 %v1569
        %1586 = vmatpush.msra.mxu0 %v1567
        %1587 = vmatmul.f32.gmra.mxu0 %v683
        %v1588 = vpop.f32.mrf.mxu0
        %v1589 = vadd.f32 0.0, %v1588
        %1590 = vmatmul.f32.gmra.mxu0 %v685
        %v1591 = vpop.f32.mrf.mxu0
        %v1592 = vadd.f32 0.0, %v1591
        %1593 = vmatmul.f32.gmra.mxu0 %v687
        %v1594 = vpop.f32.mrf.mxu0
        %v1595 = vadd.f32 0.0, %v1594
        %1596 = vdwg.mxu0
        %1597 = vmatpush.msra.mxu0 0.0
        %1598 = vmatpush.msra.mxu0 0.0
        %1599 = vmatpush.msra.mxu0 0.0
        %1600 = vmatpush.msra.mxu0 0.0
        %1601 = vmatpush.msra.mxu0 0.0
        %1602 = vmatpush.msra.mxu0 0.0
        %1603 = vmatpush.msra.mxu0 0.0
        %1604 = vmatpush.msra.mxu0 0.0
        %1605 = vmatpush.msra.mxu0 0.0
        %1606 = vmatpush.msra.mxu0 0.0
        %1607 = vmatpush.msra.mxu0 0.0
        %1608 = vmatpush.msra.mxu0 0.0
        %1609 = vmatpush.msra.mxu0 0.0
        %1610 = vmatpush.msra.mxu0 0.0
        %1611 = vmatpush.msra.mxu0 %v1570
        %1612 = vmatpush.msra.mxu0 %v1568
        %1613 = vmatmul.f32.gmra.mxu0 %v683
        %v1614 = vpop.f32.mrf.mxu0
        %1615 = vmatmul.f32.gmra.mxu0 %v685
        %v1616 = vpop.f32.mrf.mxu0
        %v1617 = vadd.f32 0.0, %v1616
        %1618 = vmatmul.f32.gmra.mxu0 %v687
        %v1619 = vpop.f32.mrf.mxu0
        %v1620 = vadd.f32 0.0, %v1619
        %1621 = vdwg.mxu0
        %1622 = vmatpush.msra.mxu0 0.0
        %1623 = vmatpush.msra.mxu0 0.0
        %1624 = vmatpush.msra.mxu0 0.0
        %1625 = vmatpush.msra.mxu0 0.0
        %1626 = vmatpush.msra.mxu0 0.0
        %1627 = vmatpush.msra.mxu0 0.0
        %1628 = vmatpush.msra.mxu0 0.0
        %1629 = vmatpush.msra.mxu0 0.0
        %1630 = vmatpush.msra.mxu0 0.0
        %1631 = vmatpush.msra.mxu0 0.0
        %1632 = vmatpush.msra.mxu0 0.0
        %1633 = vmatpush.msra.mxu0 0.0
        %1634 = vmatpush.msra.mxu0 0.0
        %1635 = vmatpush.msra.mxu0 0.0
        %1636 = vmatpush.msra.mxu0 %v1564
        %1637 = vmatpush.msra.mxu0 %v1562
        %1638 = vmatmul.f32.gmra.mxu0 %v740
        %v1639 = vpop.f32.mrf.mxu0
        %v1640 = vadd.f32 %v1589, %v1639
        %1641 = vmatmul.f32.gmra.mxu0 %v742
        %v1642 = vpop.f32.mrf.mxu0
        %v1643 = vadd.f32 %v1592, %v1642
        %1644 = vmatmul.f32.gmra.mxu0 %v744
        %v1645 = vpop.f32.mrf.mxu0
        %v1646 = vadd.f32 %v1595, %v1645
        %1647 = vdwg.mxu0
        %1648 = vmatpush.msra.mxu0 0.0
        %1649 = vmatpush.msra.mxu0 0.0
        %1650 = vmatpush.msra.mxu0 0.0
        %1651 = vmatpush.msra.mxu0 0.0
        %1652 = vmatpush.msra.mxu0 0.0
        %1653 = vmatpush.msra.mxu0 0.0
        %1654 = vmatpush.msra.mxu0 0.0
        %1655 = vmatpush.msra.mxu0 0.0
        %1656 = vmatpush.msra.mxu0 0.0
        %1657 = vmatpush.msra.mxu0 0.0
        %1658 = vmatpush.msra.mxu0 0.0
        %1659 = vmatpush.msra.mxu0 0.0
        %1660 = vmatpush.msra.mxu0 0.0
        %1661 = vmatpush.msra.mxu0 0.0
        %1662 = vmatpush.msra.mxu0 %v1565
        %1663 = vmatpush.msra.mxu0 %v1563
        %1664 = vmatmul.f32.gmra.mxu0 %v740
        %v1665 = vpop.f32.mrf.mxu0
        %1666 = vmatmul.f32.gmra.mxu0 %v742
        %v1667 = vpop.f32.mrf.mxu0
        %v1668 = vadd.f32 %v1617, %v1667
        %1669 = vmatmul.f32.gmra.mxu0 %v744
        %v1670 = vpop.f32.mrf.mxu0
        %v1671 = vadd.f32 %v1620, %v1670
        %1672 = vdwg.mxu0
        %s1673 = scalar_lea.vmem %s590, 96 [#allocation6]
        %v1674 = vld [vmem:[%s1673] sm:$0xff]
        %v1675 = vld [vmem:[%s1673 + $0x8] sm:$0xff]
        %v1676 = vld [vmem:[%s1673 + $0x10] sm:$0xff]
        %v1677 = vld [vmem:[%s1673 + $0x18] sm:$0xff]
        %s1678 = scalar_lea.vmem %s597, 96 [#allocation7]
        %v1679 = vld [vmem:[%s1678] sm:$0xff]
        %v1680 = vld [vmem:[%s1678 + $0x8] sm:$0xff]
        %v1681 = vld [vmem:[%s1678 + $0x10] sm:$0xff]
        %v1682 = vld [vmem:[%s1678 + $0x18] sm:$0xff]
        %1683 = vmatpush.msra.mxu0 0.0
        %1684 = vmatpush.msra.mxu0 0.0
        %1685 = vmatpush.msra.mxu0 0.0
        %1686 = vmatpush.msra.mxu0 0.0
        %1687 = vmatpush.msra.mxu0 0.0
        %1688 = vmatpush.msra.mxu0 0.0
        %1689 = vmatpush.msra.mxu0 0.0
        %1690 = vmatpush.msra.mxu0 0.0
        %1691 = vmatpush.msra.mxu0 0.0
        %1692 = vmatpush.msra.mxu0 0.0
        %1693 = vmatpush.msra.mxu0 0.0
        %1694 = vmatpush.msra.mxu0 0.0
        %1695 = vmatpush.msra.mxu0 0.0
        %1696 = vmatpush.msra.mxu0 0.0
        %1697 = vmatpush.msra.mxu0 %v1681
        %1698 = vmatpush.msra.mxu0 %v1679
        %1699 = vmatmul.f32.gmra.mxu0 %v814
        %v1700 = vpop.f32.mrf.mxu0
        %v1701 = vadd.f32 0.0, %v1700
        %1702 = vmatmul.f32.gmra.mxu0 %v816
        %v1703 = vpop.f32.mrf.mxu0
        %v1704 = vadd.f32 0.0, %v1703
        %1705 = vmatmul.f32.gmra.mxu0 %v818
        %v1706 = vpop.f32.mrf.mxu0
        %v1707 = vadd.f32 0.0, %v1706
        %1708 = vdwg.mxu0
        %1709 = vmatpush.msra.mxu0 0.0
        %1710 = vmatpush.msra.mxu0 0.0
        %1711 = vmatpush.msra.mxu0 0.0
        %1712 = vmatpush.msra.mxu0 0.0
        %1713 = vmatpush.msra.mxu0 0.0
        %1714 = vmatpush.msra.mxu0 0.0
        %1715 = vmatpush.msra.mxu0 0.0
        %1716 = vmatpush.msra.mxu0 0.0
        %1717 = vmatpush.msra.mxu0 0.0
        %1718 = vmatpush.msra.mxu0 0.0
        %1719 = vmatpush.msra.mxu0 0.0
        %1720 = vmatpush.msra.mxu0 0.0
        %1721 = vmatpush.msra.mxu0 0.0
        %1722 = vmatpush.msra.mxu0 0.0
        %1723 = vmatpush.msra.mxu0 %v1682
        %1724 = vmatpush.msra.mxu0 %v1680
        %1725 = vmatmul.f32.gmra.mxu0 %v814
        %v1726 = vpop.f32.mrf.mxu0
        %1727 = vmatmul.f32.gmra.mxu0 %v816
        %v1728 = vpop.f32.mrf.mxu0
        %v1729 = vadd.f32 0.0, %v1728
        %1730 = vmatmul.f32.gmra.mxu0 %v818
        %v1731 = vpop.f32.mrf.mxu0
        %v1732 = vadd.f32 0.0, %v1731
        %1733 = vdwg.mxu0
        %1734 = vmatpush.msra.mxu0 0.0
        %1735 = vmatpush.msra.mxu0 0.0
        %1736 = vmatpush.msra.mxu0 0.0
        %1737 = vmatpush.msra.mxu0 0.0
        %1738 = vmatpush.msra.mxu0 0.0
        %1739 = vmatpush.msra.mxu0 0.0
        %1740 = vmatpush.msra.mxu0 0.0
        %1741 = vmatpush.msra.mxu0 0.0
        %1742 = vmatpush.msra.mxu0 0.0
        %1743 = vmatpush.msra.mxu0 0.0
        %1744 = vmatpush.msra.mxu0 0.0
        %1745 = vmatpush.msra.mxu0 0.0
        %1746 = vmatpush.msra.mxu0 0.0
        %1747 = vmatpush.msra.mxu0 0.0
        %1748 = vmatpush.msra.mxu0 %v1676
        %1749 = vmatpush.msra.mxu0 %v1674
        %1750 = vmatmul.f32.gmra.mxu0 %v871
        %v1751 = vpop.f32.mrf.mxu0
        %v1752 = vadd.f32 %v1701, %v1751
        %1753 = vmatmul.f32.gmra.mxu0 %v873
        %v1754 = vpop.f32.mrf.mxu0
        %v1755 = vadd.f32 %v1704, %v1754
        %1756 = vmatmul.f32.gmra.mxu0 %v875
        %v1757 = vpop.f32.mrf.mxu0
        %v1758 = vadd.f32 %v1707, %v1757
        %1759 = vdwg.mxu0
        %1760 = vmatpush.msra.mxu0 0.0
        %1761 = vmatpush.msra.mxu0 0.0
        %1762 = vmatpush.msra.mxu0 0.0
        %1763 = vmatpush.msra.mxu0 0.0
        %1764 = vmatpush.msra.mxu0 0.0
        %1765 = vmatpush.msra.mxu0 0.0
        %1766 = vmatpush.msra.mxu0 0.0
        %1767 = vmatpush.msra.mxu0 0.0
        %1768 = vmatpush.msra.mxu0 0.0
        %1769 = vmatpush.msra.mxu0 0.0
        %1770 = vmatpush.msra.mxu0 0.0
        %1771 = vmatpush.msra.mxu0 0.0
        %1772 = vmatpush.msra.mxu0 0.0
        %1773 = vmatpush.msra.mxu0 0.0
        %1774 = vmatpush.msra.mxu0 %v1677
        %1775 = vmatpush.msra.mxu0 %v1675
        %1776 = vmatmul.f32.gmra.mxu0 %v871
        %v1777 = vpop.f32.mrf.mxu0
        %1778 = vmatmul.f32.gmra.mxu0 %v873
        %v1779 = vpop.f32.mrf.mxu0
        %v1780 = vadd.f32 %v1729, %v1779
        %1781 = vmatmul.f32.gmra.mxu0 %v875
        %v1782 = vpop.f32.mrf.mxu0
        %v1783 = vadd.f32 %v1732, %v1782
        %1784 = vdwg.mxu0
        %v1785 = vadd.f32 %v1640, %v1752
        %1788 = vrot.lane.b32.xlu0 %v1643, 127
        %v1789 = vpop.permute.xlu0 %1788
        %1790 = vrot.lane.b32.xlu0 %v1668, 127
        %v1791 = vpop.permute.xlu0 %1790
        %v1792 = vsel %vm935, %v1789, %v1791
        %v1794 = vadd.f32 %v1785, %v1792
        %1797 = vrot.lane.b32.xlu0 %v1755, 127
        %v1798 = vpop.permute.xlu0 %1797
        %1799 = vrot.lane.b32.xlu0 %v1780, 127
        %v1800 = vpop.permute.xlu0 %1799
        %v1801 = vsel %vm935, %v1798, %v1800
        %v1803 = vadd.f32 %v1794, %v1801
        %1806 = vrot.lane.b32.xlu0 %v1646, 126
        %v1807 = vpop.permute.xlu0 %1806
        %1808 = vrot.lane.b32.xlu0 %v1671, 126
        %v1809 = vpop.permute.xlu0 %1808
        %v1810 = vsel %vm954, %v1807, %v1809
        %v1812 = vadd.f32 %v1803, %v1810
        %1815 = vrot.lane.b32.xlu0 %v1758, 126
        %v1816 = vpop.permute.xlu0 %1815
        %1817 = vrot.lane.b32.xlu0 %v1783, 126
        %v1818 = vpop.permute.xlu0 %1817
        %v1819 = vsel %vm954, %v1816, %v1818
        %v1821 = vadd.f32 %v1812, %v1819
        %v1822 = vmax.f32 %v1821, 0.0
        %v1823 = vmul.f32 %v1822, %v968
        %v1824 = vadd.f32 %v1823, %v970
        %v1825 = vmax.f32 %v1824, 1e-12
        %v1826 = vrsqrt.pop %v1825
        %v1827 = vmul.f32 %v1826, %v1825
        %v1828 = vmul.f32 %v1827, %v1826
        %v1829 = vmul.f32 0.5, %v1828
        %v1830 = vsub.f32 1.5, %v1829
        %v1831 = vmul.f32 %v1826, %v1830
        %v1832 = vmul.f32 %v1825, %v1831
        %vm1833 = vcmp.eq.f32.partialorder %v1825, inf
        %v1834 = vsel %vm1833, %v1825, %v1832
        %vm1835 = vcmp.eq.f32.partialorder %v1825, 0.0
        %v1836 = vand.u32 %v1825, 2147483648
        %v1837 = vsel %vm1835, %v1836, %v1834
        %s1838 = scalar_lea.vmem %s604, 24 [#allocation8]
        %v1839 = vld [vmem:[%s1838] sm:$0xff]
        %v1840 = vmul.f32 %v1837, %v1839
        %v1841 = vadd.f32 %v1821, %v1840
        %v1842 = vmax.f32 %v1841, 0.0
        %v1843 = vmin.f32 %v1842, 1.0
        %s1844 = scalar_lea.vmem %s650, 24 [#allocation9]
        %1845 = vst [vmem:[%s1844] sm:$0xff] %v1843
        %s1846 = sand.u32 %s225, 1
        %s1847 = sand.u32 %s225, 1
        %s1848 = smul.addr %s1847, 32
        %s1849 = scalar_lea.vmem [#allocation9], %s1848
        // Predicated region
        $region187: #{rawsr_degradation_pipeline_v2.1} parent=161 // pred_check
          %p1850 = pneg %p235
        $region188: #{rawsr_degradation_pipeline_v2.1} parent=161 // pred_check_branch
          %1852 = sbr.rel (%p1850) target = $region190
        $region189: #{rawsr_degradation_pipeline_v2.1} parent=161 // pred_region
          %s1853 = smul.addr %s20, 8
          %s1854 = scalar_lea.vmem %s8, %s1853
          // Predicated region
          $region191: #{rawsr_degradation_pipeline_v2.1} parent=189 // pred_check
            _
          $region192: #{rawsr_degradation_pipeline_v2.1} parent=189 // pred_check_branch
            %1856 = sbr.rel (0) target = $region194
          $region193: #{rawsr_degradation_pipeline_v2.1} parent=189 // pred_region
            // Predicated region
            $region195: #{rawsr_degradation_pipeline_v2.1} parent=193 // pred_check
              _
            $region196: #{rawsr_degradation_pipeline_v2.1} parent=193 // pred_check_branch
              %1858 = sbr.rel (0) target = $region198
            $region197: #{rawsr_degradation_pipeline_v2.1} parent=193 // pred_region
              // Predicated region
              $region210: #{rawsr_degradation_pipeline_v2.1} parent=197 // pred_check
                _
              $region211: #{rawsr_degradation_pipeline_v2.1} parent=197 // pred_check_branch
                %1880 = sbr.rel (0) target = $region213
              $region212: #{rawsr_degradation_pipeline_v2.1} parent=197 // pred_region
                loop: start=0, step=1, limit=1
                $region214: #{rawsr_degradation_pipeline_v2.1} parent=212 // loop_pre_header
                  _
                $region215: #{rawsr_degradation_pipeline_v2.1} parent=212 // loop_header
                  %s1882 = sphi 0, %s1886
                  %p1883 = scmp.ge.s32.totalorder %s1882, 1
                  %s1887 = sphi %s1849, %s1849
                  %s1888 = sphi %s1854, %s1854
                $region216: #{rawsr_degradation_pipeline_v2.1} parent=212 // loop_header_branch
                  %1885 = sbr.rel (%p1883) target = $region220
                $region217: #{rawsr_degradation_pipeline_v2.1} parent=212 // loop_body
                  %v1889 = vld [vmem:[%s1887] sm:$0xff]
                  %1890 = vst [vmem:[%s1888] sm:$0xff] %v1889
                  %v1891 = vld [vmem:[%s1887 + $0x8] sm:$0xff]
                  %1892 = vst [vmem:[%s1888 + $0x10] sm:$0xff] %v1891
                  %v1893 = vld [vmem:[%s1887 + $0x10] sm:$0xff]
                  %1894 = vst [vmem:[%s1888 + $0x20] sm:$0xff] %v1893
                  %v1895 = vld [vmem:[%s1887 + $0x18] sm:$0xff]
                  %1896 = vst [vmem:[%s1888 + $0x30] sm:$0xff] %v1895
                $region218: #{rawsr_degradation_pipeline_v2.1} parent=212 // loop_footer
                  %s1886 = sadd.s32 1, %s1882
                $region219: #{rawsr_degradation_pipeline_v2.1} parent=212 // loop_footer_branch
                  %1881 = sbr.rel target = $region215
                $region220: #{rawsr_degradation_pipeline_v2.1} parent=212 // loop_exit
                  _
              $region213: #{rawsr_degradation_pipeline_v2.1} parent=197 // pred_fallthru
                _
              // Predicated region
              $region221: #{rawsr_degradation_pipeline_v2.1} parent=197 // pred_check
                _
              $region222: #{rawsr_degradation_pipeline_v2.1} parent=197 // pred_check_branch
                %1898 = sbr.rel target = $region224
              $region223: #{rawsr_degradation_pipeline_v2.1} parent=197 // pred_region
                _
              $region224: #{rawsr_degradation_pipeline_v2.1} parent=197 // pred_fallthru
                _
            $region198: #{rawsr_degradation_pipeline_v2.1} parent=193 // pred_fallthru
              _
            // Predicated region
            $region199: #{rawsr_degradation_pipeline_v2.1} parent=193 // pred_check
              _
            $region200: #{rawsr_degradation_pipeline_v2.1} parent=193 // pred_check_branch
              %1860 = sbr.rel target = $region202
            $region201: #{rawsr_degradation_pipeline_v2.1} parent=193 // pred_region
              %s1862 = ssub.s32 256, 1
              loop: start=0, step=1, limit=1
              $region203: #{rawsr_degradation_pipeline_v2.1} parent=201 // loop_pre_header
                _
              $region204: #{rawsr_degradation_pipeline_v2.1} parent=201 // loop_header
                %s1864 = sphi 0, %s1868
                %p1865 = scmp.ge.s32.totalorder %s1864, 1
                %s1869 = sphi %s1849, %s1849
                %s1870 = sphi %s1854, %s1854
              $region205: #{rawsr_degradation_pipeline_v2.1} parent=201 // loop_header_branch
                %1867 = sbr.rel (%p1865) target = $region209
              $region206: #{rawsr_degradation_pipeline_v2.1} parent=201 // loop_body
                %v1871 = vld [vmem:[%s1869] sm:%s1862]
                %1872 = vst [vmem:[%s1870] sm:%s1862] %v1871
                %v1873 = vld [vmem:[%s1869 + $0x8] sm:%s1862]
                %1874 = vst [vmem:[%s1870 + $0x10] sm:%s1862] %v1873
                %v1875 = vld [vmem:[%s1869 + $0x10] sm:%s1862]
                %1876 = vst [vmem:[%s1870 + $0x20] sm:%s1862] %v1875
                %v1877 = vld [vmem:[%s1869 + $0x18] sm:%s1862]
                %1878 = vst [vmem:[%s1870 + $0x30] sm:%s1862] %v1877
              $region207: #{rawsr_degradation_pipeline_v2.1} parent=201 // loop_footer
                %s1868 = sadd.s32 1, %s1864
              $region208: #{rawsr_degradation_pipeline_v2.1} parent=201 // loop_footer_branch
                %1863 = sbr.rel target = $region204
              $region209: #{rawsr_degradation_pipeline_v2.1} parent=201 // loop_exit
                _
            $region202: #{rawsr_degradation_pipeline_v2.1} parent=193 // pred_fallthru
              _
          $region194: #{rawsr_degradation_pipeline_v2.1} parent=189 // pred_fallthru
            _
          %1899 = vnop
        $region190: #{rawsr_degradation_pipeline_v2.1} parent=161 // pred_fallthru
          _
      $region162: #{rawsr_degradation_pipeline_v2.1} parent=5 // pred_fallthru
        _
      %p1900 = scmp.le.s32.totalorder 2, %s15
      // Predicated region
      $region225: #{rawsr_degradation_pipeline_v2.1} parent=5 // pred_check
        %p1901 = pneg %p1900
      $region226: #{rawsr_degradation_pipeline_v2.1} parent=5 // pred_check_branch
        %1903 = sbr.rel (%p1901) target = $region228
      $region227: #{rawsr_degradation_pipeline_v2.1} parent=5 // pred_region
        %s1904 = ssub.s32 %s15, 2
        // Predicated region
        $region229: #{rawsr_degradation_pipeline_v2.1} parent=227 // pred_check
          %p1905 = pneg %p241
        $region230: #{rawsr_degradation_pipeline_v2.1} parent=227 // pred_check_branch
          %1907 = sbr.rel (%p1905) target = $region232
        $region231: #{rawsr_degradation_pipeline_v2.1} parent=227 // pred_region
          %s1908 = sand.u32 %s226, 1
          %s1909 = sand.u32 %s226, 1
          %s1910 = smul.addr %s1909, 32
          %s1911 = scalar_lea.vmem [#allocation9], %s1910
        $region232: #{rawsr_degradation_pipeline_v2.1} parent=227 // pred_fallthru
          _
      $region228: #{rawsr_degradation_pipeline_v2.1} parent=5 // pred_fallthru
        _
    $region6: #{rawsr_degradation_pipeline_v2.1} parent=1 // loop_footer
      %s19 = sadd.s32 1, %s15
    $region7: #{rawsr_degradation_pipeline_v2.1} parent=1 // loop_footer_branch
      %14 = sbr.rel target = $region3
    $region8: #{rawsr_degradation_pipeline_v2.1} parent=1 // loop_exit
      _
    %1912 = vsyncpa [#allocation3], 1
    %s1913 = scalar_lea.sflag [#allocation3], 1
    %1914 = vsyncpa %s1913, 1

</llo_original>
